<compile_context>
chip_gen: v6e
topology: v6e:2x2x1
jax: 0.10.0
libtpu: 0.0.40
codegen_flags: <defaults>
</compile_context>

<pallas_src>
import functools
import math

import jax
import jax.numpy as jnp
from jax import lax
from jax.experimental import pallas as pl
from jax.experimental.pallas import tpu as pltpu


def _round_up(x, m):
    return (x + m - 1) // m * m


# ----------------------------------------------------------------------------
# Fused RPN head kernel: 3x3 conv + ReLU + (cls|bbox) 1x1 conv, one output tile
# ----------------------------------------------------------------------------

def _head_kernel(x_ref, wc_ref, bc_ref, wh_ref, bh_ref, o_ref, *, W):
    # x_ref  : (th, Wp, 3C)  f32   dy taps folded into channels, Wp = W + 2
    # wc_ref : (3, 3C, C)    bf16  per-dx conv weights
    # bc_ref : (1, C)        f32
    # wh_ref : (C, P128)     bf16  [cls | bbox | zero-pad] combined, lane-dense
    # bh_ref : (1, P128)     f32
    # o_ref  : (th*W, P128)  f32
    th, Wp, C3 = x_ref.shape
    C = wc_ref.shape[2]
    acc = jnp.zeros((th * W, C), jnp.float32)
    for dx in range(3):
        xs = x_ref[:, dx:dx + W, :].reshape(th * W, C3).astype(jnp.bfloat16)
        acc = acc + jnp.dot(xs, wc_ref[dx], preferred_element_type=jnp.float32)
    t = jnp.maximum(acc + bc_ref[...], 0.0).astype(jnp.bfloat16)   # conv output, VMEM-resident
    y = jnp.dot(t, wh_ref[...], preferred_element_type=jnp.float32) + bh_ref[...]
    o_ref[...] = y


# ----------------------------------------------------------------------------
# BoxCoder.decode kernel (weights (1,1,1,1)), tiled over proposals
# ----------------------------------------------------------------------------

_BBOX_XFORM_CLIP = math.log(1000.0 / 16.0)


def _decode_kernel(d_ref, a_ref, o_ref):
    # rows: [x1, y1, x2, y2] anchors / [dx, dy, dw, dh] deltas; columns = proposals (lanes)
    a = a_ref[...]
    d = d_ref[...]
    ax1, ay1, ax2, ay2 = a[0:1], a[1:2], a[2:3], a[3:4]
    w = ax2 - ax1
    h = ay2 - ay1
    cx = ax1 + 0.5 * w
    cy = ay1 + 0.5 * h
    dx, dy, dw, dh = d[0:1], d[1:2], d[2:3], d[3:4]
    dw = jnp.minimum(dw, _BBOX_XFORM_CLIP)
    dh = jnp.minimum(dh, _BBOX_XFORM_CLIP)
    pcx = dx * w + cx
    pcy = dy * h + cy
    pw = jnp.exp(dw) * w
    ph = jnp.exp(dh) * h
    o_ref[...] = jnp.concatenate(
        [pcx - 0.5 * pw, pcy - 0.5 * ph, pcx + 0.5 * pw, pcy + 0.5 * ph], axis=0)


def box_decode(deltas, anchors, *, pt=512):
    """deltas/anchors: (P, 4) -> boxes (P, 4).  Tiled lane-major (4, pt) blocks."""
    P = deltas.shape[0]
    P_pad = _round_up(P, pt)
    d = jnp.pad(deltas.T, ((0, 0), (0, P_pad - P)))
    a = jnp.pad(anchors.T, ((0, 0), (0, P_pad - P)))
    out = pl.pallas_call(
        _decode_kernel,
        out_shape=jax.ShapeDtypeStruct((4, P_pad), jnp.float32),
        grid=(P_pad // pt,),
        in_specs=[pl.BlockSpec((4, pt), lambda i: (0, i)),
                  pl.BlockSpec((4, pt), lambda i: (0, i))],
        out_specs=pl.BlockSpec((4, pt), lambda i: (0, i)),
        compiler_params=pltpu.CompilerParams(dimension_semantics=("parallel",)),
    )(d, a)
    return out[:, :P].T


# ----------------------------------------------------------------------------
# Fused IoU + greedy NMS kernel, batched over images (no K x K IoU matrix)
# ----------------------------------------------------------------------------

def _nms_kernel(data_ref, keep_ref, *, iou_thresh):
    # data_ref: (5, K) rows = [x1, y1, x2, y2, valid]; boxes are score-sorted (desc).
    # keep_ref: (1, K) float 0/1.
    x1 = data_ref[0:1, :]
    y1 = data_ref[1:2, :]
    x2 = data_ref[2:3, :]
    y2 = data_ref[3:4, :]
    validr = data_ref[4:5, :]
    area = (x2 - x1) * (y2 - y1)
    K = x1.shape[1]
    lane = lax.broadcasted_iota(jnp.int32, (1, K), 1)

    def body(i, keep):
        sel = lane == i
        bx1 = jnp.max(jnp.where(sel, x1, -jnp.inf), axis=1, keepdims=True)
        by1 = jnp.max(jnp.where(sel, y1, -jnp.inf), axis=1, keepdims=True)
        bx2 = jnp.max(jnp.where(sel, x2, -jnp.inf), axis=1, keepdims=True)
        by2 = jnp.max(jnp.where(sel, y2, -jnp.inf), axis=1, keepdims=True)
        bvalid = jnp.max(jnp.where(sel, validr, 0.0), axis=1, keepdims=True)
        barea = (bx2 - bx1) * (by2 - by1)
        iw = jnp.maximum(jnp.minimum(x2, bx2) - jnp.maximum(x1, bx1), 0.0)
        ih = jnp.maximum(jnp.minimum(y2, by2) - jnp.maximum(y1, by1), 0.0)
        inter = iw * ih
        denom = jnp.maximum(area + barea - inter, 1e-6)          # eps: no NaN on degenerate boxes
        iou_row = inter * pl.reciprocal(denom, approx=True)
        sup = jnp.max(
            jnp.where((iou_row > iou_thresh) & (keep > 0.5) & (lane < i), 1.0, 0.0),
            axis=1, keepdims=True)
        newval = bvalid * (1.0 - sup)
        return jnp.where(sel, newval, keep)

    keep = lax.fori_loop(0, K, body, jnp.zeros((1, K), jnp.float32))
    keep_ref[...] = keep


def nms_keep_batched(boxes_sorted, valid_sorted, iou_thresh):
    """boxes_sorted: (N, K, 4) score-sorted (with level offsets); valid: (N, K) bool."""
    N, K, _ = boxes_sorted.shape
    data = jnp.concatenate(
        [jnp.transpose(boxes_sorted, (0, 2, 1)),
         valid_sorted.astype(jnp.float32)[:, None, :]], axis=1)          # (N, 5, K)
    keep = pl.pallas_call(
        functools.partial(_nms_kernel, iou_thresh=float(iou_thresh)),
        out_shape=jax.ShapeDtypeStruct((N, 1, K), jnp.float32),
        grid=(N,),
        in_specs=[pl.BlockSpec((None, 5, K), lambda im: (im, 0, 0))],
        out_specs=pl.BlockSpec((None, 1, K), lambda im: (im, 0, 0)),
        compiler_params=pltpu.CompilerParams(dimension_semantics=("parallel",)),
    )(data)
    return keep[:, 0, :] > 0.5


# ----------------------------------------------------------------------------
# JAX glue: anchors
# ----------------------------------------------------------------------------

def make_cell_anchors(sizes, aspect_ratios):
    sizes = jnp.asarray(sizes, jnp.float32)
    ratios = jnp.asarray(aspect_ratios, jnp.float32)
    h_ratios = jnp.sqrt(ratios)
    w_ratios = 1.0 / h_ratios
    ws = (w_ratios[:, None] * sizes[None, :]).reshape(-1)
    hs = (h_ratios[:, None] * sizes[None, :]).reshape(-1)
    return jnp.round(jnp.stack([-ws, -hs, ws, hs], axis=1) / 2.0)


def grid_anchors(cell_anchors, H, W, stride_h, stride_w):
    sx = jnp.arange(W, dtype=jnp.float32) * stride_w
    sy = jnp.arange(H, dtype=jnp.float32) * stride_h
    shift_y, shift_x = jnp.meshgrid(sy, sx, indexing="ij")
    shifts = jnp.stack(
        [shift_x.reshape(-1), shift_y.reshape(-1),
         shift_x.reshape(-1), shift_y.reshape(-1)], axis=1)          # (HW, 4)
    anchors = shifts[:, None, :] + cell_anchors[None, :, :]          # (HW, A, 4)
    return anchors.reshape(-1, 4)                                    # ordering (h, w, a)


# ----------------------------------------------------------------------------
# RPN wrapper (eval-mode forward)
# ----------------------------------------------------------------------------

class RegionProposalNetworkPallas:
    def __init__(self, in_channels, anchor_sizes, aspect_ratios,
                 pre_nms_top_n, post_nms_top_n, nms_thresh, key):
        self.in_channels = in_channels
        self.cell_anchors = make_cell_anchors(anchor_sizes, aspect_ratios)
        self.A = self.cell_anchors.shape[0]
        self._pre_nms_top_n = pre_nms_top_n      # dict {'training', 'testing'}
        self._post_nms_top_n = post_nms_top_n
        self.nms_thresh = nms_thresh
        self.min_size = 1e-3

        # RPNHead parameters (torchvision init: normal std=0.01, bias=0).
        # conv_w[dx][dy*C + cin, cout] corresponds to the 3x3 conv tap (dy, dx).
        # head_w columns: [0..A) cls logits, [A..5A) bbox deltas (a-major, coord-minor),
        # padded with zeros to a lane-dense width of 128.
        # TODO(synk): if pretrained torchvision weights were loaded, the conv/1x1
        # out-channel orderings would need to be permuted into this layout.
        k1, k2, k3 = jax.random.split(key, 3)
        C, A = in_channels, self.A
        self.P128 = _round_up(5 * A, 128)
        self.conv_w = (0.01 * jax.random.normal(k1, (3, 3 * C, C), jnp.float32)
                       ).astype(jnp.bfloat16)
        self.conv_b = jnp.zeros((1, C), jnp.float32)
        hw = jnp.zeros((C, self.P128), jnp.float32)
        hw = hw.at[:, :A].set(0.01 * jax.random.normal(k2, (C, A), jnp.float32))
        hw = hw.at[:, A:5 * A].set(0.01 * jax.random.normal(k3, (C, 4 * A), jnp.float32))
        self.head_w = hw.astype(jnp.bfloat16)
        self.head_b = jnp.zeros((1, self.P128), jnp.float32)

    def pre_nms_top_n(self):
        return self._pre_nms_top_n["testing"]     # eval mode

    def post_nms_top_n(self):
        return self._post_nms_top_n["testing"]

    # --- fused RPN head (single pallas_call per FPN level) -------------------
    def _run_head(self, feat_nchw):
        N, C, H, W = feat_nchw.shape
        A, P128 = self.A, self.P128
        # NCHW -> NHWC; activations stay f32 in HBM (robust sublane-offset slicing),
        # they are cast to bf16 inside the kernel for the MXU.
        x = jnp.transpose(feat_nchw, (0, 2, 3, 1)).astype(jnp.float32)

        # Row-tile size: ~512 output rows per grid step, sublane-aligned (th*W % 8 == 0).
        th = max(1, min(H, 512 // max(W, 1)))
        sub = 8 // math.gcd(W, 8)
        th = max(sub, _round_up(th, sub))
        n_rt = -(-H // th)
        H_pad = n_rt * th
        Wp = W + 2
        C3 = 3 * C

        # 1 halo row on top, (H_pad - H + 1) on the bottom, 1 column left/right; then
        # fold the three dy taps into channels -> no row halo needed per tile.
        xp = jnp.pad(x, ((0, 0), (1, H_pad - H + 1), (1, 1), (0, 0)))
        x3 = jnp.concatenate(
            [xp[:, 0:H_pad], xp[:, 1:H_pad + 1], xp[:, 2:H_pad + 2]], axis=-1)

        M = N * H_pad * W
        out = pl.pallas_call(
            functools.partial(_head_kernel, W=W),
            out_shape=jax.ShapeDtypeStruct((M, P128), jnp.float32),
            grid=(N, n_rt),
            in_specs=[
                pl.BlockSpec((None, th, Wp, C3), lambda n, i: (n, i, 0, 0)),
                pl.BlockSpec((3, C3, C), lambda n, i: (0, 0, 0)),
                pl.BlockSpec((1, C), lambda n, i: (0, 0)),
                pl.BlockSpec((C, P128), lambda n, i: (0, 0)),
                pl.BlockSpec((1, P128), lambda n, i: (0, 0)),
            ],
            out_specs=pl.BlockSpec((th * W, P128),
                                   lambda n, i, n_rt=n_rt: (n * n_rt + i, 0)),
            compiler_params=pltpu.CompilerParams(
                dimension_semantics=("parallel", "parallel")),
        )(x3, self.conv_w, self.conv_b, self.head_w, self.head_b)

        out = out.reshape(N, H_pad, W, P128)[:, :H]      # drop padded rows
        cls = out[..., :A].reshape(N, H * W * A)                     # ordering (h, w, a)
        bbox = out[..., A:5 * A].reshape(N, H * W * A, 4)
        return cls, bbox

    # --- filter_proposals (batched over images) -------------------------------
    def _filter_proposals(self, proposals, objectness, image_size, num_per_level):
        N = proposals.shape[0]
        H_img, W_img = image_size
        levels_vec = jnp.concatenate(
            [jnp.full((n,), i, jnp.int32) for i, n in enumerate(num_per_level)])

        tops, offset = [], 0
        for n in num_per_level:
            k = min(self.pre_nms_top_n(), n)
            _, idx = lax.top_k(objectness[:, offset:offset + n], k)
            tops.append(idx + offset)
            offset += n
        top_idx = jnp.concatenate(tops, axis=1)                       # (N, K)
        K = top_idx.shape[1]

        scores = jnp.take_along_axis(objectness, top_idx, axis=1)
        lvl = levels_vec[top_idx]
        boxes = jnp.take_along_axis(proposals, top_idx[..., None], axis=1)  # (N, K, 4)

        # clip_boxes_to_image
        x1 = jnp.clip(boxes[..., 0], 0.0, float(W_img))
        y1 = jnp.clip(boxes[..., 1], 0.0, float(H_img))
        x2 = jnp.clip(boxes[..., 2], 0.0, float(W_img))
        y2 = jnp.clip(boxes[..., 3], 0.0, float(H_img))
        boxes = jnp.stack([x1, y1, x2, y2], axis=-1)
        # remove_small_boxes (validity mask; invalid boxes never suppress / are never kept)
        valid = ((x2 - x1) >= self.min_size) & ((y2 - y1) >= self.min_size)

        # batched_nms: per-level coordinate offsets
        max_coord = jnp.max(boxes.reshape(N, -1), axis=1)
        boxes_nms = boxes + (lvl.astype(jnp.float32) * (max_coord[:, None] + 1.0))[..., None]

        # sort by score (descending) per image
        order = jnp.argsort(-scores, axis=1)
        boxes_s = jnp.take_along_axis(boxes, order[..., None], axis=1)
        boxes_nms_s = jnp.take_along_axis(boxes_nms, order[..., None], axis=1)
        scores_s = jnp.take_along_axis(scores, order, axis=1)
        valid_s = jnp.take_along_axis(valid, order, axis=1)

        # pad K to a lane-dense multiple of 128 for the NMS kernel
        K_pad = _round_up(K, 128)
        pad = K_pad - K
        if pad:
            boxes_s = jnp.pad(boxes_s, ((0, 0), (0, pad), (0, 0)))
            boxes_nms_s = jnp.pad(boxes_nms_s, ((0, 0), (0, pad), (0, 0)))
            scores_s = jnp.pad(scores_s, ((0, 0), (0, pad)), constant_values=-jnp.inf)
            valid_s = jnp.pad(valid_s, ((0, 0), (0, pad)))

        keep = nms_keep_batched(boxes_nms_s, valid_s, self.nms_thresh) & valid_s

        # TODO(synk): torchvision returns variable-length proposal lists; emulated here
        # with fixed post_nms_top_n slots + validity mask (JAX needs static shapes).
        masked = jnp.where(keep, scores_s, -jnp.inf)
        post_n = min(self.post_nms_top_n(), K_pad)
        top_scores, top_i = lax.top_k(masked, post_n)
        out_valid = top_scores > -jnp.inf
        out_boxes = jnp.where(out_valid[..., None],
                              jnp.take_along_axis(boxes_s, top_i[..., None], axis=1), 0.0)
        return out_boxes, top_scores, out_valid

    # --- forward --------------------------------------------------------------
    def forward(self, image_size, features):
        """image_size: (H_img, W_img); features: list of NCHW arrays (one per level)."""
        H_img, W_img = image_size
        N_img = features[0].shape[0]
        A = self.A

        obj_lvls, dlt_lvls, anc_lvls, num_per_level = [], [], [], []
        # TODO(synk): multiple FPN levels could be concatenated along M into a single
        # fused-head pallas_call; with one level per call this is already fully fused.
        for f in features:
            _, _, H, W = f.shape
            cls, bbox = self._run_head(f)            # fused Pallas head
            obj_lvls.append(cls)
            dlt_lvls.append(bbox)
            anc_lvls.append(
                grid_anchors(self.cell_anchors, H, W, H_img // H, W_img // W))
            num_per_level.append(H * W * A)

        objectness = jnp.concatenate(obj_lvls, axis=1)              # (N, total)
        deltas = jnp.concatenate(dlt_lvls, axis=1)                  # (N, total, 4)
        anchors = jnp.concatenate(anc_lvls, axis=0)                 # (total, 4)
        total = anchors.shape[0]

        # BoxCoder.decode (weights (1,1,1,1), the torchvision RPN default) — Pallas, tiled
        anchors_all = jnp.tile(anchors[None], (N_img, 1, 1)).reshape(-1, 4)
        proposals = box_decode(deltas.reshape(-1, 4), anchors_all)
        proposals = proposals.reshape(N_img, total, 4)

        out_boxes, out_scores, out_valid = self._filter_proposals(
            proposals, objectness, image_size, num_per_level)

        # TODO(synk): training branch (anchor/target matching, fg/bg sampling, losses)
        # is not implemented; eval-mode forward returns (boxes, {}).
        losses = {}
        final_boxes = [out_boxes[i] for i in range(N_img)]
        final_scores = [out_scores[i] for i in range(N_img)]
        final_valid = [out_valid[i] for i in range(N_img)]
        return final_boxes, final_scores, final_valid, losses


# ----------------------------------------------------------------------------
# Example run
# ----------------------------------------------------------------------------

if __name__ == "__main__":
    key = jax.random.PRNGKey(0)
    k_feat, k_params = jax.random.split(key)

    # Small shapes: batch=2, channels=4, feature map 16x16, image 64x64, A=3 anchors.
    N, C, H, W = 2, 4, 16, 16
    image_size = (64, 64)
    feat = jax.random.normal(k_feat, (N, C, H, W), jnp.float32)

    rpn = RegionProposalNetworkPallas(
        in_channels=C,
        anchor_sizes=(32.0,),
        aspect_ratios=(0.5, 1.0, 2.0),
        pre_nms_top_n={"training": 256, "testing": 256},
        post_nms_top_n={"training": 64, "testing": 64},
        nms_thresh=0.7,
        key=k_params,
    )

    boxes, scores, valid, losses = rpn.forward(image_size, [feat])
    jax.block_until_ready((boxes, scores, valid))
    assert len(boxes) == N and boxes[0].shape == (64, 4)
    print("KERNEL_OK")
</pallas_src>

<mosaic_0001>
module attributes {stable_mosaic.version = 11 : i64} {
  func.func @_head_kernel(%arg0: i32, %arg1: i32, %arg2: memref<1x16x18x12xf32, #tpu.memory_space<vmem>>, %arg3: memref<3x12x4xbf16, #tpu.memory_space<vmem>>, %arg4: memref<1x4xf32, #tpu.memory_space<vmem>>, %arg5: memref<4x128xbf16, #tpu.memory_space<vmem>>, %arg6: memref<1x128xf32, #tpu.memory_space<vmem>>, %arg7: memref<256x128xf32, #tpu.memory_space<vmem>>) attributes {dimension_semantics = [#tpu.dimension_semantics<parallel>, #tpu.dimension_semantics<parallel>], iteration_bounds = array<i64: 2, 1>, scalar_prefetch = 0 : i64, scratch_operands = 0 : i64, tpu.core_type = #tpu.core_type<tc>, window_params = [{transform_indices = @transform_0, window_bounds = array<i64: 1, 16, 18, 12>}, {pipeline_mode = #tpu.pipeline_mode<synchronous>, transform_indices = @transform_1, window_bounds = array<i64: 3, 12, 4>}, {pipeline_mode = #tpu.pipeline_mode<synchronous>, transform_indices = @transform_2, window_bounds = array<i64: 1, 4>}, {pipeline_mode = #tpu.pipeline_mode<synchronous>, transform_indices = @transform_3, window_bounds = array<i64: 4, 128>}, {pipeline_mode = #tpu.pipeline_mode<synchronous>, transform_indices = @transform_4, window_bounds = array<i64: 1, 128>}, {transform_indices = @transform_5, window_bounds = array<i64: 256, 128>}]} {
    %cst = arith.constant 0.000000e+00 : f32
    %0 = vector.broadcast %cst : f32 to vector<256x4xf32>
    %c0 = arith.constant 0 : index
    %c0_0 = arith.constant 0 : index
    %c0_1 = arith.constant 0 : index
    %c0_2 = arith.constant 0 : index
    %1 = vector.load %arg2[%c0, %c0_0, %c0_1, %c0_2] : memref<1x16x18x12xf32, #tpu.memory_space<vmem>>, vector<1x16x16x12xf32>
    %2 = vector.shape_cast %1 : vector<1x16x16x12xf32> to vector<16x16x12xf32>
    %3 = vector.shape_cast %2 : vector<16x16x12xf32> to vector<256x12xf32>
    %4 = arith.truncf %3 : vector<256x12xf32> to vector<256x12xbf16>
    %c0_3 = arith.constant 0 : index
    %c0_4 = arith.constant 0 : index
    %c0_5 = arith.constant 0 : index
    %5 = vector.load %arg3[%c0_3, %c0_4, %c0_5] : memref<3x12x4xbf16, #tpu.memory_space<vmem>>, vector<1x12x4xbf16>
    %6 = vector.shape_cast %5 : vector<1x12x4xbf16> to vector<12x4xbf16>
    %cst_6 = arith.constant dense<0.000000e+00> : vector<256x4xf32>
    %7 = tpu.matmul %4, %6, %cst_6 {dimension_numbers = #tpu.dot_dimension_numbers<[1], [0], [0], [1], [0, 0, 1, 1], [], []>} : vector<256x12xbf16>, vector<12x4xbf16>, vector<256x4xf32> -> vector<256x4xf32>
    %8 = arith.addf %0, %7 : vector<256x4xf32>
    %c0_7 = arith.constant 0 : index
    %c0_8 = arith.constant 0 : index
    %c1 = arith.constant 1 : index
    %c0_9 = arith.constant 0 : index
    %9 = vector.load %arg2[%c0_7, %c0_8, %c1, %c0_9] : memref<1x16x18x12xf32, #tpu.memory_space<vmem>>, vector<1x16x16x12xf32>
    %10 = vector.shape_cast %9 : vector<1x16x16x12xf32> to vector<16x16x12xf32>
    %11 = vector.shape_cast %10 : vector<16x16x12xf32> to vector<256x12xf32>
    %12 = arith.truncf %11 : vector<256x12xf32> to vector<256x12xbf16>
    %c1_10 = arith.constant 1 : index
    %c0_11 = arith.constant 0 : index
    %c0_12 = arith.constant 0 : index
    %13 = vector.load %arg3[%c1_10, %c0_11, %c0_12] : memref<3x12x4xbf16, #tpu.memory_space<vmem>>, vector<1x12x4xbf16>
    %14 = vector.shape_cast %13 : vector<1x12x4xbf16> to vector<12x4xbf16>
    %cst_13 = arith.constant dense<0.000000e+00> : vector<256x4xf32>
    %15 = tpu.matmul %12, %14, %cst_13 {dimension_numbers = #tpu.dot_dimension_numbers<[1], [0], [0], [1], [0, 0, 1, 1], [], []>} : vector<256x12xbf16>, vector<12x4xbf16>, vector<256x4xf32> -> vector<256x4xf32>
    %16 = arith.addf %8, %15 : vector<256x4xf32>
    %c0_14 = arith.constant 0 : index
    %c0_15 = arith.constant 0 : index
    %c2 = arith.constant 2 : index
    %c0_16 = arith.constant 0 : index
    %17 = vector.load %arg2[%c0_14, %c0_15, %c2, %c0_16] : memref<1x16x18x12xf32, #tpu.memory_space<vmem>>, vector<1x16x16x12xf32>
    %18 = vector.shape_cast %17 : vector<1x16x16x12xf32> to vector<16x16x12xf32>
    %19 = vector.shape_cast %18 : vector<16x16x12xf32> to vector<256x12xf32>
    %20 = arith.truncf %19 : vector<256x12xf32> to vector<256x12xbf16>
    %c2_17 = arith.constant 2 : index
    %c0_18 = arith.constant 0 : index
    %c0_19 = arith.constant 0 : index
    %21 = vector.load %arg3[%c2_17, %c0_18, %c0_19] : memref<3x12x4xbf16, #tpu.memory_space<vmem>>, vector<1x12x4xbf16>
    %22 = vector.shape_cast %21 : vector<1x12x4xbf16> to vector<12x4xbf16>
    %cst_20 = arith.constant dense<0.000000e+00> : vector<256x4xf32>
    %23 = tpu.matmul %20, %22, %cst_20 {dimension_numbers = #tpu.dot_dimension_numbers<[1], [0], [0], [1], [0, 0, 1, 1], [], []>} : vector<256x12xbf16>, vector<12x4xbf16>, vector<256x4xf32> -> vector<256x4xf32>
    %24 = arith.addf %16, %23 : vector<256x4xf32>
    %c0_21 = arith.constant 0 : index
    %c0_22 = arith.constant 0 : index
    %25 = vector.load %arg4[%c0_21, %c0_22] : memref<1x4xf32, #tpu.memory_space<vmem>>, vector<1x4xf32>
    %26 = vector.broadcast %25 : vector<1x4xf32> to vector<256x4xf32>
    %27 = arith.addf %24, %26 : vector<256x4xf32>
    %cst_23 = arith.constant 0.000000e+00 : f32
    %28 = vector.broadcast %cst_23 : f32 to vector<256x4xf32>
    %29 = arith.maximumf %27, %28 : vector<256x4xf32>
    %30 = arith.truncf %29 : vector<256x4xf32> to vector<256x4xbf16>
    %c0_24 = arith.constant 0 : index
    %c0_25 = arith.constant 0 : index
    %31 = vector.load %arg5[%c0_24, %c0_25] : memref<4x128xbf16, #tpu.memory_space<vmem>>, vector<4x128xbf16>
    %cst_26 = arith.constant dense<0.000000e+00> : vector<256x128xf32>
    %32 = tpu.matmul %30, %31, %cst_26 {dimension_numbers = #tpu.dot_dimension_numbers<[1], [0], [0], [1], [0, 0, 1, 1], [], []>} : vector<256x4xbf16>, vector<4x128xbf16>, vector<256x128xf32> -> vector<256x128xf32>
    %c0_27 = arith.constant 0 : index
    %c0_28 = arith.constant 0 : index
    %33 = vector.load %arg6[%c0_27, %c0_28] : memref<1x128xf32, #tpu.memory_space<vmem>>, vector<1x128xf32>
    %34 = vector.broadcast %33 : vector<1x128xf32> to vector<256x128xf32>
    %35 = arith.addf %32, %34 : vector<256x128xf32>
    %c0_29 = arith.constant 0 : index
    %c0_30 = arith.constant 0 : index
    %36 = vector.load %arg7[%c0_29, %c0_30] : memref<256x128xf32, #tpu.memory_space<vmem>>, vector<256x128xf32>
    tpu.vector_store %arg7[%c0_29, %c0_30], %35 {strides = array<i32>} : memref<256x128xf32, #tpu.memory_space<vmem>>, vector<256x128xf32>,
    return
  }
  func.func @transform_0(%arg0: i32, %arg1: i32) -> (i32, i32, i32, i32) {
    %c0_i32 = arith.constant 0 : i32
    %c0_i32_0 = arith.constant 0 : i32
    %c0_i32_1 = arith.constant 0 : i32
    return %arg0, %arg1, %c0_i32, %c0_i32_0 : i32, i32, i32, i32
  }
  func.func @transform_1(%arg0: i32, %arg1: i32) -> (i32, i32, i32) {
    %c0_i32 = arith.constant 0 : i32
    %c0_i32_0 = arith.constant 0 : i32
    %c0_i32_1 = arith.constant 0 : i32
    %c0_i32_2 = arith.constant 0 : i32
    return %c0_i32, %c0_i32_0, %c0_i32_1 : i32, i32, i32
  }
  func.func @transform_2(%arg0: i32, %arg1: i32) -> (i32, i32) {
    %c0_i32 = arith.constant 0 : i32
    %c0_i32_0 = arith.constant 0 : i32
    %c0_i32_1 = arith.constant 0 : i32
    return %c0_i32, %c0_i32_0 : i32, i32
  }
  func.func @transform_3(%arg0: i32, %arg1: i32) -> (i32, i32) {
    %c0_i32 = arith.constant 0 : i32
    %c0_i32_0 = arith.constant 0 : i32
    %c0_i32_1 = arith.constant 0 : i32
    return %c0_i32, %c0_i32_0 : i32, i32
  }
  func.func @transform_4(%arg0: i32, %arg1: i32) -> (i32, i32) {
    %c0_i32 = arith.constant 0 : i32
    %c0_i32_0 = arith.constant 0 : i32
    %c0_i32_1 = arith.constant 0 : i32
    return %c0_i32, %c0_i32_0 : i32, i32
  }
  func.func @transform_5(%arg0: i32, %arg1: i32) -> (i32, i32) {
    %c1_i32 = arith.constant 1 : i32
    %0 = arith.muli %arg0, %c1_i32 : i32
    %1 = arith.addi %0, %arg1 : i32
    %c0_i32 = arith.constant 0 : i32
    %c0_i32_0 = arith.constant 0 : i32
    return %1, %c0_i32 : i32, i32
  }
}

</mosaic_0001>

<llo_original>
// kernel: tpu_custom_call.1
$region0: #{tpu_custom_call.1}
  #allocation0 [shape = 'u32[]', space=smem, size = 0x4, offset = 0x4, fixed_abs, tag = 'smem constant byte address 0x4 - core index']
  #allocation1 [shape = 'u32[144,128]{1,0:T(1,128)}', space=vmem, size = 0x12000, scoped, tag = 'internal scratch']
  %s0 = inlined_call_operand.vmem [shape: f32[2,16,18,12], index: 0, kind: input, shape index: {}]
  %s1 = inlined_call_operand.vmem [shape: bf16[3,12,4], index: 1, kind: input, shape index: {}]
  %s2 = inlined_call_operand.vmem [shape: f32[1,4], index: 2, kind: input, shape index: {}]
  %s3 = inlined_call_operand.vmem [shape: bf16[4,128], index: 3, kind: input, shape index: {}]
  %s4 = inlined_call_operand.vmem [shape: f32[1,128], index: 4, kind: input, shape index: {}]
  %s5 = inlined_call_operand.hbm [shape: f32[512,128], index: 5, kind: output, shape index: {}]
  %s6 = sld [smem:[#allocation0]]
  $region53: #{tpu_custom_call.1} parent=0
    _
  %s8 = ssub.s32 1, %s6
  %s9 = scalar_select 0, %s8, %s6
  $region1: #{tpu_custom_call.1} parent=0
    #allocation2 [shape = 'u8[262144]{0}', space=vmem, size = 0x40000, scoped, tag = 'output window, operand 0']
    #allocation3 [shape = 's32[2]{0}', space=sflag, size = 0x8, scoped, tag = 'scoped memory for tpu_custom_call.1']
    %10 = vsyncpa [#allocation3], 0
    %s11 = scalar_lea.sflag [#allocation3], 1
    %12 = vsyncpa %s11, 0
    loop: start=0, step=1, limit=4
    $region2: #{tpu_custom_call.1} parent=1 // loop_pre_header
      _
    $region3: #{tpu_custom_call.1} parent=1 // loop_header
      %s14 = sphi 0, %s18
      %p15 = scmp.ge.s32.totalorder %s14, 4
      %s21 = sphi 0, %s33
      %s22 = sphi 0, %s29
      %s23 = sphi 0, %s21
      %s24 = sphi 0, %s22
      %s25 = sphi 0, %s23
      %s26 = sphi 0, %s24
      %s38 = sphi 0, %s40
      %s41 = sphi 0, %s38
      %s42 = sphi 0, %s41
      %s58 = sphi 0, %s42
      %s62 = sphi 0, %s62
      %s64 = sphi 0, %s62
      %s65 = sphi 0, %s64
      %s79 = sphi 0, %s65
      %s83 = sphi 0, %s83
      %s85 = sphi 0, %s83
      %s86 = sphi 0, %s85
      %s100 = sphi 0, %s86
      %s104 = sphi 0, %s104
      %s106 = sphi 0, %s104
      %s107 = sphi 0, %s106
      %s121 = sphi 0, %s107
      %s125 = sphi 0, %s125
      %s127 = sphi 0, %s125
      %s128 = sphi 0, %s127
      %s142 = sphi 0, %s128
      %s150 = sphi 0, %s152
      %s153 = sphi 0, %s150
      %s154 = sphi 0, %s153
      %s170 = sphi 0, %s154
    $region4: #{tpu_custom_call.1} parent=1 // loop_header_branch
      %17 = sbr.rel (%p15) target = $region8
    $region5: #{tpu_custom_call.1} parent=1 // loop_body
      %s19 = ssub.s32 %s14, 1
      %s20 = ssub.s32 %s14, 2
      %s27 = sadd.s32 1, %s22
      %p28 = scmp.ge.s32.totalorder %s27, 1
      %s29 = scalar_select %p28, 0, %s27
      %s30 = sadd.s32 1, %s21
      %s31 = scalar_select %p28, %s30, %s21
      %p32 = scmp.ge.s32.totalorder %s31, 2
      %s33 = scalar_select %p32, 0, %s31
      %s34 = ssub.s32 %s21, %s33
      %s35 = ssub.s32 %s22, %s29
      %s36 = sor.u32 %s34, %s35
      %p37 = scmp.eq.s32.totalorder %s36, 0
      %s39 = sadd.s32 %s38, 1
      %s40 = scalar_select %p37, %s38, %s39
      %p43 = pneg %p37
      %p44 = scmp.eq.s32.totalorder %s14, 1
      %p45 = por %p43, %p44
      %p46 = scmp.ne.s32.totalorder %s38, %s41
      %p47 = scmp.eq.s32.totalorder %s14, 0
      %p48 = por %p46, %p47
      %p49 = scmp.ne.s32.totalorder %s38, %s41
      %p50 = scmp.eq.s32.totalorder %s19, 1
      %p51 = por %p49, %p50
      %p52 = scmp.ne.s32.totalorder %s41, %s42
      %p53 = scmp.eq.s32.totalorder %s19, 0
      %p54 = por %p52, %p53
      %p55 = scmp.ne.s32.totalorder %s41, %s42
      %p56 = scmp.eq.s32.totalorder %s20, 1
      %p57 = por %p55, %p56
      %p59 = scmp.ne.s32.totalorder %s42, %s58
      %p60 = scmp.eq.s32.totalorder %s20, 0
      %p61 = por %p59, %p60
      %s63 = sadd.s32 %s62, 1
      %p66 = scmp.eq.s32.totalorder %s14, 1
      %p67 = scmp.ne.s32.totalorder %s62, %s64
      %p68 = scmp.eq.s32.totalorder %s14, 0
      %p69 = por %p67, %p68
      %p70 = scmp.ne.s32.totalorder %s62, %s64
      %p71 = scmp.eq.s32.totalorder %s19, 1
      %p72 = por %p70, %p71
      %p73 = scmp.ne.s32.totalorder %s64, %s65
      %p74 = scmp.eq.s32.totalorder %s19, 0
      %p75 = por %p73, %p74
      %p76 = scmp.ne.s32.totalorder %s64, %s65
      %p77 = scmp.eq.s32.totalorder %s20, 1
      %p78 = por %p76, %p77
      %p80 = scmp.ne.s32.totalorder %s65, %s79
      %p81 = scmp.eq.s32.totalorder %s20, 0
      %p82 = por %p80, %p81
      %s84 = sadd.s32 %s83, 1
      %p87 = scmp.eq.s32.totalorder %s14, 1
      %p88 = scmp.ne.s32.totalorder %s83, %s85
      %p89 = scmp.eq.s32.totalorder %s14, 0
      %p90 = por %p88, %p89
      %p91 = scmp.ne.s32.totalorder %s83, %s85
      %p92 = scmp.eq.s32.totalorder %s19, 1
      %p93 = por %p91, %p92
      %p94 = scmp.ne.s32.totalorder %s85, %s86
      %p95 = scmp.eq.s32.totalorder %s19, 0
      %p96 = por %p94, %p95
      %p97 = scmp.ne.s32.totalorder %s85, %s86
      %p98 = scmp.eq.s32.totalorder %s20, 1
      %p99 = por %p97, %p98
      %p101 = scmp.ne.s32.totalorder %s86, %s100
      %p102 = scmp.eq.s32.totalorder %s20, 0
      %p103 = por %p101, %p102
      %s105 = sadd.s32 %s104, 1
      %p108 = scmp.eq.s32.totalorder %s14, 1
      %p109 = scmp.ne.s32.totalorder %s104, %s106
      %p110 = scmp.eq.s32.totalorder %s14, 0
      %p111 = por %p109, %p110
      %p112 = scmp.ne.s32.totalorder %s104, %s106
      %p113 = scmp.eq.s32.totalorder %s19, 1
      %p114 = por %p112, %p113
      %p115 = scmp.ne.s32.totalorder %s106, %s107
      %p116 = scmp.eq.s32.totalorder %s19, 0
      %p117 = por %p115, %p116
      %p118 = scmp.ne.s32.totalorder %s106, %s107
      %p119 = scmp.eq.s32.totalorder %s20, 1
      %p120 = por %p118, %p119
      %p122 = scmp.ne.s32.totalorder %s107, %s121
      %p123 = scmp.eq.s32.totalorder %s20, 0
      %p124 = por %p122, %p123
      %s126 = sadd.s32 %s125, 1
      %p129 = scmp.eq.s32.totalorder %s14, 1
      %p130 = scmp.ne.s32.totalorder %s125, %s127
      %p131 = scmp.eq.s32.totalorder %s14, 0
      %p132 = por %p130, %p131
      %p133 = scmp.ne.s32.totalorder %s125, %s127
      %p134 = scmp.eq.s32.totalorder %s19, 1
      %p135 = por %p133, %p134
      %p136 = scmp.ne.s32.totalorder %s127, %s128
      %p137 = scmp.eq.s32.totalorder %s19, 0
      %p138 = por %p136, %p137
      %p139 = scmp.ne.s32.totalorder %s127, %s128
      %p140 = scmp.eq.s32.totalorder %s20, 1
      %p141 = por %p139, %p140
      %p143 = scmp.ne.s32.totalorder %s128, %s142
      %p144 = scmp.eq.s32.totalorder %s20, 0
      %p145 = por %p143, %p144
      %s146 = sadd.s32 %s21, %s22
      %s147 = sadd.s32 %s33, %s29
      %s148 = ssub.s32 %s146, %s147
      %p149 = scmp.eq.s32.totalorder %s148, 0
      %s151 = sadd.s32 %s150, 1
      %s152 = scalar_select %p149, %s150, %s151
      %p155 = pneg %p149
      %p156 = scmp.eq.s32.totalorder %s14, 1
      %p157 = por %p155, %p156
      %p158 = scmp.ne.s32.totalorder %s150, %s153
      %p159 = scmp.eq.s32.totalorder %s14, 0
      %p160 = por %p158, %p159
      %p161 = scmp.ne.s32.totalorder %s150, %s153
      %p162 = scmp.eq.s32.totalorder %s19, 1
      %p163 = por %p161, %p162
      %p164 = scmp.ne.s32.totalorder %s153, %s154
      %p165 = scmp.eq.s32.totalorder %s19, 0
      %p166 = por %p164, %p165
      %p167 = scmp.ne.s32.totalorder %s153, %s154
      %p168 = scmp.eq.s32.totalorder %s20, 1
      %p169 = por %p167, %p168
      %p171 = scmp.ne.s32.totalorder %s154, %s170
      %p172 = scmp.eq.s32.totalorder %s20, 0
      %p173 = por %p171, %p172
      %p174 = scmp.le.s32.totalorder 1, %s14
      %p175 = scmp.lt.s32.totalorder %s14, 3
      %p176 = pnand %p174, %p175
      %p177 = pneg %p176
      // Predicated region
      $region9: #{tpu_custom_call.1} parent=5 // pred_check
        _
      $region10: #{tpu_custom_call.1} parent=5 // pred_check_branch
        %179 = sbr.rel (%p176) target = $region12
      $region11: #{tpu_custom_call.1} parent=5 // pred_region
        %s180 = ssub.s32 %s14, 1
        // Predicated region
        $region13: #{tpu_custom_call.1} parent=11 // pred_check
          %p181 = pneg %p75
        $region14: #{tpu_custom_call.1} parent=11 // pred_check_branch
          %183 = sbr.rel (%p181) target = $region16
        $region15: #{tpu_custom_call.1} parent=11 // pred_region
          _
        $region16: #{tpu_custom_call.1} parent=11 // pred_fallthru
          _
        // Predicated region
        $region17: #{tpu_custom_call.1} parent=11 // pred_check
          %p184 = pneg %p96
        $region18: #{tpu_custom_call.1} parent=11 // pred_check_branch
          %186 = sbr.rel (%p184) target = $region20
        $region19: #{tpu_custom_call.1} parent=11 // pred_region
          _
        $region20: #{tpu_custom_call.1} parent=11 // pred_fallthru
          _
        // Predicated region
        $region21: #{tpu_custom_call.1} parent=11 // pred_check
          %p187 = pneg %p117
        $region22: #{tpu_custom_call.1} parent=11 // pred_check_branch
          %189 = sbr.rel (%p187) target = $region24
        $region23: #{tpu_custom_call.1} parent=11 // pred_region
          _
        $region24: #{tpu_custom_call.1} parent=11 // pred_fallthru
          _
        // Predicated region
        $region25: #{tpu_custom_call.1} parent=11 // pred_check
          %p190 = pneg %p138
        $region26: #{tpu_custom_call.1} parent=11 // pred_check_branch
          %192 = sbr.rel (%p190) target = $region28
        $region27: #{tpu_custom_call.1} parent=11 // pred_region
          _
        $region28: #{tpu_custom_call.1} parent=11 // pred_fallthru
          _
      $region12: #{tpu_custom_call.1} parent=5 // pred_fallthru
        _
      %p193 = scmp.lt.s32.totalorder %s14, 2
      // Predicated region
      $region29: #{tpu_custom_call.1} parent=5 // pred_check
        %p194 = pneg %p193
      $region30: #{tpu_custom_call.1} parent=5 // pred_check_branch
        %196 = sbr.rel (%p194) target = $region32
      $region31: #{tpu_custom_call.1} parent=5 // pred_region
        // Predicated region
        $region33: #{tpu_custom_call.1} parent=31 // pred_check
          %p197 = pneg %p48
        $region34: #{tpu_custom_call.1} parent=31 // pred_check_branch
          %199 = sbr.rel (%p197) target = $region36
        $region35: #{tpu_custom_call.1} parent=31 // pred_region
          %s200 = smul.u32 16, %s22
          %p201 = scmp.lt.s32.totalorder %s21, 1
          %s202 = scalar_select %p201, %s21, 1
          %p203 = scmp.lt.s32.totalorder %s200, 15
          %s204 = scalar_select %p203, %s200, 15
          %s205 = smul.addr %s204, 3
          %s206 = smul.addr %s202, 48
          %s207 = sadd.s32 %s205, %s206
          %s208 = smul.addr %s207, 8
          %s209 = scalar_lea.vmem %s0, %s208
          %s210 = smul.u32 16, %s22
        $region36: #{tpu_custom_call.1} parent=31 // pred_fallthru
          _
      $region32: #{tpu_custom_call.1} parent=5 // pred_fallthru
        _
      %p211 = scmp.le.s32.totalorder 1, %s14
      %p212 = scmp.lt.s32.totalorder %s14, 3
      %p213 = pnand %p211, %p212
      %p214 = pneg %p213
      // Predicated region
      $region37: #{tpu_custom_call.1} parent=5 // pred_check
        _
      $region38: #{tpu_custom_call.1} parent=5 // pred_check_branch
        %216 = sbr.rel (%p213) target = $region40
      $region39: #{tpu_custom_call.1} parent=5 // pred_region
        %s217 = ssub.s32 %s14, 1
        %s218 = smul.u32 16, %s24
        %p219 = scmp.lt.s32.totalorder %s23, 1
        %s220 = scalar_select %p219, %s23, 1
        %p221 = scmp.lt.s32.totalorder %s218, 15
        %s222 = scalar_select %p221, %s218, 15
        %s223 = smul.addr %s222, 3
        %s224 = smul.addr %s220, 48
        %s225 = sadd.s32 %s223, %s224
        %s226 = smul.addr %s225, 8
        %s227 = scalar_lea.vmem %s0, %s226
        %p228 = pneg %p54
        %p229 = pneg %p51
        %p230 = pneg %p75
        %p231 = pneg %p72
        %p232 = pneg %p96
        %p233 = pneg %p93
        %p234 = pneg %p117
        %p235 = pneg %p114
        %p236 = pneg %p138
        %p237 = pneg %p135
        %p238 = pneg %p166
        %p239 = pneg %p163
        %s240 = sand.u32 %s153, 1
        %s241 = scalar_lea.sflag [#allocation3], %s240
        %s242 = sand.u32 %s153, 1
        %s243 = smul.addr %s242, 256
        %s244 = scalar_lea.vmem [#allocation2], %s243
        %s245 = smul.u32 16, %s24
        %p246 = scmp.lt.s32.totalorder %s23, 1
        %s247 = scalar_select %p246, %s23, 1
        %p248 = scmp.lt.s32.totalorder %s245, 15
        %s249 = scalar_select %p248, %s245, 15
        %s250 = smul.addr %s249, 3
        %s251 = smul.addr %s247, 48
        %s252 = sadd.s32 %s250, %s251
        %s253 = smul.addr %s252, 8
        %s254 = scalar_lea.vmem %s0, %s253
        %s255 = smul.u32 16, %s24
        %s256 = sadd.s32 %s23, %s24
        %s257 = smul.u32 32, %s256
        %v259 = vld [vmem:[%s254] sm:$0xff]
        %v260 = vld [vmem:[%s254 + $0x8] sm:$0xff]
        %v261 = vld [vmem:[%s254 + $0x18] sm:$0xff]
        %v262 = vld [vmem:[%s254 + $0x20] sm:$0xff]
        %v263 = vld [vmem:[%s254 + $0x30] sm:$0xff]
        %v264 = vld [vmem:[%s254 + $0x38] sm:$0xff]
        %v265 = vld [vmem:[%s254 + $0x48] sm:$0xff]
        %v266 = vld [vmem:[%s254 + $0x50] sm:$0xff]
        %v267 = vld [vmem:[%s254 + $0x60] sm:$0xff]
        %v268 = vld [vmem:[%s254 + $0x68] sm:$0xff]
        %v269 = vld [vmem:[%s254 + $0x78] sm:$0xff]
        %v270 = vld [vmem:[%s254 + $0x80] sm:$0xff]
        %v271 = vld [vmem:[%s254 + $0x90] sm:$0xff]
        %v272 = vld [vmem:[%s254 + $0x98] sm:$0xff]
        %v273 = vld [vmem:[%s254 + $0xa8] sm:$0xff]
        %v274 = vld [vmem:[%s254 + $0xb0] sm:$0xff]
        %v275 = vld [vmem:[%s254 + $0xc0] sm:$0xff]
        %v276 = vld [vmem:[%s254 + $0xc8] sm:$0xff]
        %v277 = vld [vmem:[%s254 + $0xd8] sm:$0xff]
        %v278 = vld [vmem:[%s254 + $0xe0] sm:$0xff]
        %v279 = vld [vmem:[%s254 + $0xf0] sm:$0xff]
        %v280 = vld [vmem:[%s254 + $0xf8] sm:$0xff]
        %v281 = vld [vmem:[%s254 + $0x108] sm:$0xff]
        %v282 = vld [vmem:[%s254 + $0x110] sm:$0xff]
        %v283 = vld [vmem:[%s254 + $0x120] sm:$0xff]
        %v284 = vld [vmem:[%s254 + $0x128] sm:$0xff]
        %v285 = vld [vmem:[%s254 + $0x138] sm:$0xff]
        %v286 = vld [vmem:[%s254 + $0x140] sm:$0xff]
        %v287 = vld [vmem:[%s254 + $0x150] sm:$0xff]
        %v288 = vld [vmem:[%s254 + $0x158] sm:$0xff]
        %v289 = vld [vmem:[%s254 + $0x168] sm:$0xff]
        %v290 = vld [vmem:[%s254 + $0x170] sm:$0xff]
        %v291 = vpack.c.bf16 %v260, %v259
        %v292 = vpack.c.bf16 %v262, %v261
        %v293 = vpack.c.bf16 %v264, %v263
        %v294 = vpack.c.bf16 %v266, %v265
        %v295 = vpack.c.bf16 %v268, %v267
        %v296 = vpack.c.bf16 %v270, %v269
        %v297 = vpack.c.bf16 %v272, %v271
        %v298 = vpack.c.bf16 %v274, %v273
        %v299 = vpack.c.bf16 %v276, %v275
        %v300 = vpack.c.bf16 %v278, %v277
        %v301 = vpack.c.bf16 %v280, %v279
        %v302 = vpack.c.bf16 %v282, %v281
        %v303 = vpack.c.bf16 %v284, %v283
        %v304 = vpack.c.bf16 %v286, %v285
        %v305 = vpack.c.bf16 %v288, %v287
        %v306 = vpack.c.bf16 %v290, %v289
        %v307 = vld [vmem:[%s1] sm:$0xf]
        %v308 = vld [vmem:[%s1 + $0x4] sm:$0x3]
        %v309 = vld [vmem:[%s254 + $0x1] sm:$0xff]
        %v310 = vld [vmem:[%s254 + $0x9] sm:$0xff]
        %v311 = vld [vmem:[%s254 + $0x19] sm:$0xff]
        %v312 = vld [vmem:[%s254 + $0x21] sm:$0xff]
        %v313 = vld [vmem:[%s254 + $0x31] sm:$0xff]
        %v314 = vld [vmem:[%s254 + $0x39] sm:$0xff]
        %v315 = vld [vmem:[%s254 + $0x49] sm:$0xff]
        %v316 = vld [vmem:[%s254 + $0x51] sm:$0xff]
        %v317 = vld [vmem:[%s254 + $0x61] sm:$0xff]
        %v318 = vld [vmem:[%s254 + $0x69] sm:$0xff]
        %v319 = vld [vmem:[%s254 + $0x79] sm:$0xff]
        %v320 = vld [vmem:[%s254 + $0x81] sm:$0xff]
        %v321 = vld [vmem:[%s254 + $0x91] sm:$0xff]
        %v322 = vld [vmem:[%s254 + $0x99] sm:$0xff]
        %v323 = vld [vmem:[%s254 + $0xa9] sm:$0xff]
        %v324 = vld [vmem:[%s254 + $0xb1] sm:$0xff]
        %v325 = vld [vmem:[%s254 + $0xc1] sm:$0xff]
        %v326 = vld [vmem:[%s254 + $0xc9] sm:$0xff]
        %v327 = vld [vmem:[%s254 + $0xd9] sm:$0xff]
        %v328 = vld [vmem:[%s254 + $0xe1] sm:$0xff]
        %v329 = vld [vmem:[%s254 + $0xf1] sm:$0xff]
        %v330 = vld [vmem:[%s254 + $0xf9] sm:$0xff]
        %v331 = vld [vmem:[%s254 + $0x109] sm:$0xff]
        %v332 = vld [vmem:[%s254 + $0x111] sm:$0xff]
        %v333 = vld [vmem:[%s254 + $0x121] sm:$0xff]
        %v334 = vld [vmem:[%s254 + $0x129] sm:$0xff]
        %v335 = vld [vmem:[%s254 + $0x139] sm:$0xff]
        %v336 = vld [vmem:[%s254 + $0x141] sm:$0xff]
        %v337 = vld [vmem:[%s254 + $0x151] sm:$0xff]
        %v338 = vld [vmem:[%s254 + $0x159] sm:$0xff]
        %v339 = vld [vmem:[%s254 + $0x169] sm:$0xff]
        %v340 = vld [vmem:[%s254 + $0x171] sm:$0xff]
        %v341 = vpack.c.bf16 %v310, %v309
        %v342 = vpack.c.bf16 %v312, %v311
        %v343 = vpack.c.bf16 %v314, %v313
        %v344 = vpack.c.bf16 %v316, %v315
        %v345 = vpack.c.bf16 %v318, %v317
        %v346 = vpack.c.bf16 %v320, %v319
        %v347 = vpack.c.bf16 %v322, %v321
        %v348 = vpack.c.bf16 %v324, %v323
        %v349 = vpack.c.bf16 %v326, %v325
        %v350 = vpack.c.bf16 %v328, %v327
        %v351 = vpack.c.bf16 %v330, %v329
        %v352 = vpack.c.bf16 %v332, %v331
        %v353 = vpack.c.bf16 %v334, %v333
        %v354 = vpack.c.bf16 %v336, %v335
        %v355 = vpack.c.bf16 %v338, %v337
        %v356 = vpack.c.bf16 %v340, %v339
        %s357 = scalar_lea.vmem %s1, 8
        %v358 = vld [vmem:[%s357] sm:$0xf]
        %v359 = vld [vmem:[%s357 + $0x4] sm:$0x3]
        %v362 = vunpack.c.l.b16 %v358
        %v363 = vunpack.c.l.b16 %v359
        %v364 = vpack.c.b16 %v363, %v362
        %vm365 = vcmask 97280
        %v367 = vsel %vm365, %v341, 0
        %v370 = vsel %vm365, %v342, 0
        %v373 = vsel %vm365, %v343, 0
        %v376 = vsel %vm365, %v344, 0
        %v379 = vsel %vm365, %v345, 0
        %v382 = vsel %vm365, %v346, 0
        %v385 = vsel %vm365, %v347, 0
        %v388 = vsel %vm365, %v348, 0
        %v391 = vsel %vm365, %v349, 0
        %v394 = vsel %vm365, %v350, 0
        %v397 = vsel %vm365, %v351, 0
        %v400 = vsel %vm365, %v352, 0
        %v403 = vsel %vm365, %v353, 0
        %v406 = vsel %vm365, %v354, 0
        %v409 = vsel %vm365, %v355, 0
        %v412 = vsel %vm365, %v356, 0
        %vm414 = vcmask 1045504
        %v416 = vsel %vm414, %v364, 0
        %418 = vmatprep.subr.bf16.mxu0 0
        %419 = vmatpush1.bf16.msra.mxu0 0
        %420 = vmatprep.subr.bf16.mxu0 0
        %421 = vmatpush1.bf16.msra.mxu0 0
        %422 = vmatprep.subr.bf16.mxu0 0
        %423 = vmatpush1.bf16.msra.mxu0 0
        %424 = vmatprep.subr.bf16.mxu0 0
        %425 = vmatpush1.bf16.msra.mxu0 0
        %426 = vmatprep.subr.bf16.mxu0 0
        %427 = vmatpush1.bf16.msra.mxu0 0
        %428 = vmatprep.subr.bf16.mxu0 0
        %429 = vmatpush1.bf16.msra.mxu0 0
        %430 = vmatprep.subr.bf16.mxu0 0
        %431 = vmatpush1.bf16.msra.mxu0 0
        %432 = vmatprep.subr.bf16.mxu0 0
        %433 = vmatpush1.bf16.msra.mxu0 %v416
        %434 = vmatprep.subr.bf16.mxu0 0
        %435 = vmatpush2.bf16.msra.mxu0 0
        %436 = vmatprep.subr.bf16.mxu0 0
        %437 = vmatpush2.bf16.msra.mxu0 0
        %438 = vmatprep.subr.bf16.mxu0 0
        %439 = vmatpush2.bf16.msra.mxu0 0
        %440 = vmatprep.subr.bf16.mxu0 0
        %441 = vmatpush2.bf16.msra.mxu0 0
        %442 = vmatprep.subr.bf16.mxu0 0
        %443 = vmatpush2.bf16.msra.mxu0 0
        %444 = vmatprep.subr.bf16.mxu0 0
        %445 = vmatpush2.bf16.msra.mxu0 0
        %446 = vmatprep.subr.bf16.mxu0 0
        %447 = vmatpush2.bf16.msra.mxu0 0
        %448 = vmatprep.subr.bf16.mxu0 0
        %449 = vmatpush2.bf16.msra.mxu0 0
        %450 = vmatprep.mubr.bf16.mxu0 0
        %451 = vmatmul.mubr.bf16.gmra.mxu0 %v367
        %v452 = vpop.f32.mrf.mxu0
        %v453 = vadd.f32 0.0, %v452
        %v454 = vpop.f32.mrf.mxu0
        %v455 = vpop.f32.mrf.mxu0
        %v456 = vadd.f32 0.0, %v455
        %v457 = vpop.f32.mrf.mxu0
        %458 = vmatprep.mubr.bf16.mxu0 0
        %459 = vmatmul.mubr.bf16.gmra.mxu0 %v370
        %v460 = vpop.f32.mrf.mxu0
        %v461 = vadd.f32 0.0, %v460
        %v462 = vpop.f32.mrf.mxu0
        %v463 = vpop.f32.mrf.mxu0
        %v464 = vadd.f32 0.0, %v463
        %v465 = vpop.f32.mrf.mxu0
        %466 = vmatprep.mubr.bf16.mxu0 0
        %467 = vmatmul.mubr.bf16.gmra.mxu0 %v373
        %v468 = vpop.f32.mrf.mxu0
        %v469 = vadd.f32 0.0, %v468
        %v470 = vpop.f32.mrf.mxu0
        %v471 = vpop.f32.mrf.mxu0
        %v472 = vadd.f32 0.0, %v471
        %v473 = vpop.f32.mrf.mxu0
        %474 = vmatprep.mubr.bf16.mxu0 0
        %475 = vmatmul.mubr.bf16.gmra.mxu0 %v376
        %v476 = vpop.f32.mrf.mxu0
        %v477 = vadd.f32 0.0, %v476
        %v478 = vpop.f32.mrf.mxu0
        %v479 = vpop.f32.mrf.mxu0
        %v480 = vadd.f32 0.0, %v479
        %v481 = vpop.f32.mrf.mxu0
        %482 = vmatprep.mubr.bf16.mxu0 0
        %483 = vmatmul.mubr.bf16.gmra.mxu0 %v379
        %v484 = vpop.f32.mrf.mxu0
        %v485 = vadd.f32 0.0, %v484
        %v486 = vpop.f32.mrf.mxu0
        %v487 = vpop.f32.mrf.mxu0
        %v488 = vadd.f32 0.0, %v487
        %v489 = vpop.f32.mrf.mxu0
        %490 = vmatprep.mubr.bf16.mxu0 0
        %491 = vmatmul.mubr.bf16.gmra.mxu0 %v382
        %v492 = vpop.f32.mrf.mxu0
        %v493 = vadd.f32 0.0, %v492
        %v494 = vpop.f32.mrf.mxu0
        %v495 = vpop.f32.mrf.mxu0
        %v496 = vadd.f32 0.0, %v495
        %v497 = vpop.f32.mrf.mxu0
        %498 = vmatprep.mubr.bf16.mxu0 0
        %499 = vmatmul.mubr.bf16.gmra.mxu0 %v385
        %v500 = vpop.f32.mrf.mxu0
        %v501 = vadd.f32 0.0, %v500
        %v502 = vpop.f32.mrf.mxu0
        %v503 = vpop.f32.mrf.mxu0
        %v504 = vadd.f32 0.0, %v503
        %v505 = vpop.f32.mrf.mxu0
        %506 = vmatprep.mubr.bf16.mxu0 0
        %507 = vmatmul.mubr.bf16.gmra.mxu0 %v388
        %v508 = vpop.f32.mrf.mxu0
        %v509 = vadd.f32 0.0, %v508
        %v510 = vpop.f32.mrf.mxu0
        %v511 = vpop.f32.mrf.mxu0
        %v512 = vadd.f32 0.0, %v511
        %v513 = vpop.f32.mrf.mxu0
        %514 = vmatprep.mubr.bf16.mxu0 0
        %515 = vmatmul.mubr.bf16.gmra.mxu0 %v391
        %v516 = vpop.f32.mrf.mxu0
        %v517 = vadd.f32 0.0, %v516
        %v518 = vpop.f32.mrf.mxu0
        %v519 = vpop.f32.mrf.mxu0
        %v520 = vadd.f32 0.0, %v519
        %v521 = vpop.f32.mrf.mxu0
        %522 = vmatprep.mubr.bf16.mxu0 0
        %523 = vmatmul.mubr.bf16.gmra.mxu0 %v394
        %v524 = vpop.f32.mrf.mxu0
        %v525 = vadd.f32 0.0, %v524
        %v526 = vpop.f32.mrf.mxu0
        %v527 = vpop.f32.mrf.mxu0
        %v528 = vadd.f32 0.0, %v527
        %v529 = vpop.f32.mrf.mxu0
        %530 = vmatprep.mubr.bf16.mxu0 0
        %531 = vmatmul.mubr.bf16.gmra.mxu0 %v397
        %v532 = vpop.f32.mrf.mxu0
        %v533 = vadd.f32 0.0, %v532
        %v534 = vpop.f32.mrf.mxu0
        %v535 = vpop.f32.mrf.mxu0
        %v536 = vadd.f32 0.0, %v535
        %v537 = vpop.f32.mrf.mxu0
        %538 = vmatprep.mubr.bf16.mxu0 0
        %539 = vmatmul.mubr.bf16.gmra.mxu0 %v400
        %v540 = vpop.f32.mrf.mxu0
        %v541 = vadd.f32 0.0, %v540
        %v542 = vpop.f32.mrf.mxu0
        %v543 = vpop.f32.mrf.mxu0
        %v544 = vadd.f32 0.0, %v543
        %v545 = vpop.f32.mrf.mxu0
        %546 = vmatprep.mubr.bf16.mxu0 0
        %547 = vmatmul.mubr.bf16.gmra.mxu0 %v403
        %v548 = vpop.f32.mrf.mxu0
        %v549 = vadd.f32 0.0, %v548
        %v550 = vpop.f32.mrf.mxu0
        %v551 = vpop.f32.mrf.mxu0
        %v552 = vadd.f32 0.0, %v551
        %v553 = vpop.f32.mrf.mxu0
        %554 = vmatprep.mubr.bf16.mxu0 0
        %555 = vmatmul.mubr.bf16.gmra.mxu0 %v406
        %v556 = vpop.f32.mrf.mxu0
        %v557 = vadd.f32 0.0, %v556
        %v558 = vpop.f32.mrf.mxu0
        %v559 = vpop.f32.mrf.mxu0
        %v560 = vadd.f32 0.0, %v559
        %v561 = vpop.f32.mrf.mxu0
        %562 = vmatprep.mubr.bf16.mxu0 0
        %563 = vmatmul.mubr.bf16.gmra.mxu0 %v409
        %v564 = vpop.f32.mrf.mxu0
        %v565 = vadd.f32 0.0, %v564
        %v566 = vpop.f32.mrf.mxu0
        %v567 = vpop.f32.mrf.mxu0
        %v568 = vadd.f32 0.0, %v567
        %v569 = vpop.f32.mrf.mxu0
        %570 = vmatprep.mubr.bf16.mxu0 0
        %571 = vmatmul.mubr.bf16.gmra.mxu0 %v412
        %v572 = vpop.f32.mrf.mxu0
        %v573 = vadd.f32 0.0, %v572
        %v574 = vpop.f32.mrf.mxu0
        %v575 = vpop.f32.mrf.mxu0
        %v576 = vadd.f32 0.0, %v575
        %v577 = vpop.f32.mrf.mxu0
        %578 = vdwg.mxu0
        %v581 = vunpack.c.l.b16 %v307
        %v582 = vunpack.c.l.b16 %v308
        %v583 = vpack.c.b16 %v582, %v581
        %v585 = vsel %vm365, %v291, 0
        %v588 = vsel %vm365, %v292, 0
        %v591 = vsel %vm365, %v293, 0
        %v594 = vsel %vm365, %v294, 0
        %v597 = vsel %vm365, %v295, 0
        %v600 = vsel %vm365, %v296, 0
        %v603 = vsel %vm365, %v297, 0
        %v606 = vsel %vm365, %v298, 0
        %v609 = vsel %vm365, %v299, 0
        %v612 = vsel %vm365, %v300, 0
        %v615 = vsel %vm365, %v301, 0
        %v618 = vsel %vm365, %v302, 0
        %v621 = vsel %vm365, %v303, 0
        %v624 = vsel %vm365, %v304, 0
        %v627 = vsel %vm365, %v305, 0
        %v630 = vsel %vm365, %v306, 0
        %v633 = vsel %vm414, %v583, 0
        %635 = vmatprep.subr.bf16.mxu0 0
        %636 = vmatpush1.bf16.msra.mxu0 0
        %637 = vmatprep.subr.bf16.mxu0 0
        %638 = vmatpush1.bf16.msra.mxu0 0
        %639 = vmatprep.subr.bf16.mxu0 0
        %640 = vmatpush1.bf16.msra.mxu0 0
        %641 = vmatprep.subr.bf16.mxu0 0
        %642 = vmatpush1.bf16.msra.mxu0 0
        %643 = vmatprep.subr.bf16.mxu0 0
        %644 = vmatpush1.bf16.msra.mxu0 0
        %645 = vmatprep.subr.bf16.mxu0 0
        %646 = vmatpush1.bf16.msra.mxu0 0
        %647 = vmatprep.subr.bf16.mxu0 0
        %648 = vmatpush1.bf16.msra.mxu0 0
        %649 = vmatprep.subr.bf16.mxu0 0
        %650 = vmatpush1.bf16.msra.mxu0 %v633
        %651 = vmatprep.subr.bf16.mxu0 0
        %652 = vmatpush2.bf16.msra.mxu0 0
        %653 = vmatprep.subr.bf16.mxu0 0
        %654 = vmatpush2.bf16.msra.mxu0 0
        %655 = vmatprep.subr.bf16.mxu0 0
        %656 = vmatpush2.bf16.msra.mxu0 0
        %657 = vmatprep.subr.bf16.mxu0 0
        %658 = vmatpush2.bf16.msra.mxu0 0
        %659 = vmatprep.subr.bf16.mxu0 0
        %660 = vmatpush2.bf16.msra.mxu0 0
        %661 = vmatprep.subr.bf16.mxu0 0
        %662 = vmatpush2.bf16.msra.mxu0 0
        %663 = vmatprep.subr.bf16.mxu0 0
        %664 = vmatpush2.bf16.msra.mxu0 0
        %665 = vmatprep.subr.bf16.mxu0 0
        %666 = vmatpush2.bf16.msra.mxu0 0
        %667 = vmatprep.mubr.bf16.mxu0 0
        %668 = vmatmul.mubr.bf16.gmra.mxu0 %v585
        %v669 = vpop.f32.mrf.mxu0
        %v670 = vadd.f32 %v453, %v669
        %v671 = vpop.f32.mrf.mxu0
        %v672 = vpop.f32.mrf.mxu0
        %v673 = vadd.f32 %v456, %v672
        %v674 = vpop.f32.mrf.mxu0
        %675 = vmatprep.mubr.bf16.mxu0 0
        %676 = vmatmul.mubr.bf16.gmra.mxu0 %v588
        %v677 = vpop.f32.mrf.mxu0
        %v678 = vadd.f32 %v461, %v677
        %v679 = vpop.f32.mrf.mxu0
        %v680 = vpop.f32.mrf.mxu0
        %v681 = vadd.f32 %v464, %v680
        %v682 = vpop.f32.mrf.mxu0
        %683 = vmatprep.mubr.bf16.mxu0 0
        %684 = vmatmul.mubr.bf16.gmra.mxu0 %v591
        %v685 = vpop.f32.mrf.mxu0
        %v686 = vadd.f32 %v469, %v685
        %v687 = vpop.f32.mrf.mxu0
        %v688 = vpop.f32.mrf.mxu0
        %v689 = vadd.f32 %v472, %v688
        %v690 = vpop.f32.mrf.mxu0
        %691 = vmatprep.mubr.bf16.mxu0 0
        %692 = vmatmul.mubr.bf16.gmra.mxu0 %v594
        %v693 = vpop.f32.mrf.mxu0
        %v694 = vadd.f32 %v477, %v693
        %v695 = vpop.f32.mrf.mxu0
        %v696 = vpop.f32.mrf.mxu0
        %v697 = vadd.f32 %v480, %v696
        %v698 = vpop.f32.mrf.mxu0
        %699 = vmatprep.mubr.bf16.mxu0 0
        %700 = vmatmul.mubr.bf16.gmra.mxu0 %v597
        %v701 = vpop.f32.mrf.mxu0
        %v702 = vadd.f32 %v485, %v701
        %v703 = vpop.f32.mrf.mxu0
        %v704 = vpop.f32.mrf.mxu0
        %v705 = vadd.f32 %v488, %v704
        %v706 = vpop.f32.mrf.mxu0
        %707 = vmatprep.mubr.bf16.mxu0 0
        %708 = vmatmul.mubr.bf16.gmra.mxu0 %v600
        %v709 = vpop.f32.mrf.mxu0
        %v710 = vadd.f32 %v493, %v709
        %v711 = vpop.f32.mrf.mxu0
        %v712 = vpop.f32.mrf.mxu0
        %v713 = vadd.f32 %v496, %v712
        %v714 = vpop.f32.mrf.mxu0
        %715 = vmatprep.mubr.bf16.mxu0 0
        %716 = vmatmul.mubr.bf16.gmra.mxu0 %v603
        %v717 = vpop.f32.mrf.mxu0
        %v718 = vadd.f32 %v501, %v717
        %v719 = vpop.f32.mrf.mxu0
        %v720 = vpop.f32.mrf.mxu0
        %v721 = vadd.f32 %v504, %v720
        %v722 = vpop.f32.mrf.mxu0
        %723 = vmatprep.mubr.bf16.mxu0 0
        %724 = vmatmul.mubr.bf16.gmra.mxu0 %v606
        %v725 = vpop.f32.mrf.mxu0
        %v726 = vadd.f32 %v509, %v725
        %v727 = vpop.f32.mrf.mxu0
        %v728 = vpop.f32.mrf.mxu0
        %v729 = vadd.f32 %v512, %v728
        %v730 = vpop.f32.mrf.mxu0
        %731 = vmatprep.mubr.bf16.mxu0 0
        %732 = vmatmul.mubr.bf16.gmra.mxu0 %v609
        %v733 = vpop.f32.mrf.mxu0
        %v734 = vadd.f32 %v517, %v733
        %v735 = vpop.f32.mrf.mxu0
        %v736 = vpop.f32.mrf.mxu0
        %v737 = vadd.f32 %v520, %v736
        %v738 = vpop.f32.mrf.mxu0
        %739 = vmatprep.mubr.bf16.mxu0 0
        %740 = vmatmul.mubr.bf16.gmra.mxu0 %v612
        %v741 = vpop.f32.mrf.mxu0
        %v742 = vadd.f32 %v525, %v741
        %v743 = vpop.f32.mrf.mxu0
        %v744 = vpop.f32.mrf.mxu0
        %v745 = vadd.f32 %v528, %v744
        %v746 = vpop.f32.mrf.mxu0
        %747 = vmatprep.mubr.bf16.mxu0 0
        %748 = vmatmul.mubr.bf16.gmra.mxu0 %v615
        %v749 = vpop.f32.mrf.mxu0
        %v750 = vadd.f32 %v533, %v749
        %v751 = vpop.f32.mrf.mxu0
        %v752 = vpop.f32.mrf.mxu0
        %v753 = vadd.f32 %v536, %v752
        %v754 = vpop.f32.mrf.mxu0
        %755 = vmatprep.mubr.bf16.mxu0 0
        %756 = vmatmul.mubr.bf16.gmra.mxu0 %v618
        %v757 = vpop.f32.mrf.mxu0
        %v758 = vadd.f32 %v541, %v757
        %v759 = vpop.f32.mrf.mxu0
        %v760 = vpop.f32.mrf.mxu0
        %v761 = vadd.f32 %v544, %v760
        %v762 = vpop.f32.mrf.mxu0
        %763 = vmatprep.mubr.bf16.mxu0 0
        %764 = vmatmul.mubr.bf16.gmra.mxu0 %v621
        %v765 = vpop.f32.mrf.mxu0
        %v766 = vadd.f32 %v549, %v765
        %v767 = vpop.f32.mrf.mxu0
        %v768 = vpop.f32.mrf.mxu0
        %v769 = vadd.f32 %v552, %v768
        %v770 = vpop.f32.mrf.mxu0
        %771 = vmatprep.mubr.bf16.mxu0 0
        %772 = vmatmul.mubr.bf16.gmra.mxu0 %v624
        %v773 = vpop.f32.mrf.mxu0
        %v774 = vadd.f32 %v557, %v773
        %v775 = vpop.f32.mrf.mxu0
        %v776 = vpop.f32.mrf.mxu0
        %v777 = vadd.f32 %v560, %v776
        %v778 = vpop.f32.mrf.mxu0
        %779 = vmatprep.mubr.bf16.mxu0 0
        %780 = vmatmul.mubr.bf16.gmra.mxu0 %v627
        %v781 = vpop.f32.mrf.mxu0
        %v782 = vadd.f32 %v565, %v781
        %v783 = vpop.f32.mrf.mxu0
        %v784 = vpop.f32.mrf.mxu0
        %v785 = vadd.f32 %v568, %v784
        %v786 = vpop.f32.mrf.mxu0
        %787 = vmatprep.mubr.bf16.mxu0 0
        %788 = vmatmul.mubr.bf16.gmra.mxu0 %v630
        %v789 = vpop.f32.mrf.mxu0
        %v790 = vadd.f32 %v573, %v789
        %v791 = vpop.f32.mrf.mxu0
        %v792 = vpop.f32.mrf.mxu0
        %v793 = vadd.f32 %v576, %v792
        %v794 = vpop.f32.mrf.mxu0
        %795 = vdwg.mxu0
        %v796 = vld [vmem:[%s254 + $0x2] sm:$0xff]
        %v797 = vld [vmem:[%s254 + $0xa] sm:$0xff]
        %v798 = vld [vmem:[%s254 + $0x1a] sm:$0xff]
        %v799 = vld [vmem:[%s254 + $0x22] sm:$0xff]
        %v800 = vld [vmem:[%s254 + $0x32] sm:$0xff]
        %v801 = vld [vmem:[%s254 + $0x3a] sm:$0xff]
        %v802 = vld [vmem:[%s254 + $0x4a] sm:$0xff]
        %v803 = vld [vmem:[%s254 + $0x52] sm:$0xff]
        %v804 = vld [vmem:[%s254 + $0x62] sm:$0xff]
        %v805 = vld [vmem:[%s254 + $0x6a] sm:$0xff]
        %v806 = vld [vmem:[%s254 + $0x7a] sm:$0xff]
        %v807 = vld [vmem:[%s254 + $0x82] sm:$0xff]
        %v808 = vld [vmem:[%s254 + $0x92] sm:$0xff]
        %v809 = vld [vmem:[%s254 + $0x9a] sm:$0xff]
        %v810 = vld [vmem:[%s254 + $0xaa] sm:$0xff]
        %v811 = vld [vmem:[%s254 + $0xb2] sm:$0xff]
        %v812 = vld [vmem:[%s254 + $0xc2] sm:$0xff]
        %v813 = vld [vmem:[%s254 + $0xca] sm:$0xff]
        %v814 = vld [vmem:[%s254 + $0xda] sm:$0xff]
        %v815 = vld [vmem:[%s254 + $0xe2] sm:$0xff]
        %v816 = vld [vmem:[%s254 + $0xf2] sm:$0xff]
        %v817 = vld [vmem:[%s254 + $0xfa] sm:$0xff]
        %v818 = vld [vmem:[%s254 + $0x10a] sm:$0xff]
        %v819 = vld [vmem:[%s254 + $0x112] sm:$0xff]
        %v820 = vld [vmem:[%s254 + $0x122] sm:$0xff]
        %v821 = vld [vmem:[%s254 + $0x12a] sm:$0xff]
        %v822 = vld [vmem:[%s254 + $0x13a] sm:$0xff]
        %v823 = vld [vmem:[%s254 + $0x142] sm:$0xff]
        %v824 = vld [vmem:[%s254 + $0x152] sm:$0xff]
        %v825 = vld [vmem:[%s254 + $0x15a] sm:$0xff]
        %v826 = vld [vmem:[%s254 + $0x16a] sm:$0xff]
        %v827 = vld [vmem:[%s254 + $0x172] sm:$0xff]
        %v828 = vpack.c.bf16 %v797, %v796
        %v829 = vpack.c.bf16 %v799, %v798
        %v830 = vpack.c.bf16 %v801, %v800
        %v831 = vpack.c.bf16 %v803, %v802
        %v832 = vpack.c.bf16 %v805, %v804
        %v833 = vpack.c.bf16 %v807, %v806
        %v834 = vpack.c.bf16 %v809, %v808
        %v835 = vpack.c.bf16 %v811, %v810
        %v836 = vpack.c.bf16 %v813, %v812
        %v837 = vpack.c.bf16 %v815, %v814
        %v838 = vpack.c.bf16 %v817, %v816
        %v839 = vpack.c.bf16 %v819, %v818
        %v840 = vpack.c.bf16 %v821, %v820
        %v841 = vpack.c.bf16 %v823, %v822
        %v842 = vpack.c.bf16 %v825, %v824
        %v843 = vpack.c.bf16 %v827, %v826
        %s844 = scalar_lea.vmem %s1, 16
        %v845 = vld [vmem:[%s844] sm:$0xf]
        %v846 = vld [vmem:[%s844 + $0x4] sm:$0x3]
        %v849 = vunpack.c.l.b16 %v845
        %v850 = vunpack.c.l.b16 %v846
        %v851 = vpack.c.b16 %v850, %v849
        %v853 = vsel %vm365, %v828, 0
        %v856 = vsel %vm365, %v829, 0
        %v859 = vsel %vm365, %v830, 0
        %v862 = vsel %vm365, %v831, 0
        %v865 = vsel %vm365, %v832, 0
        %v868 = vsel %vm365, %v833, 0
        %v871 = vsel %vm365, %v834, 0
        %v874 = vsel %vm365, %v835, 0
        %v877 = vsel %vm365, %v836, 0
        %v880 = vsel %vm365, %v837, 0
        %v883 = vsel %vm365, %v838, 0
        %v886 = vsel %vm365, %v839, 0
        %v889 = vsel %vm365, %v840, 0
        %v892 = vsel %vm365, %v841, 0
        %v895 = vsel %vm365, %v842, 0
        %v898 = vsel %vm365, %v843, 0
        %v901 = vsel %vm414, %v851, 0
        %903 = vmatprep.subr.bf16.mxu0 0
        %904 = vmatpush1.bf16.msra.mxu0 0
        %905 = vmatprep.subr.bf16.mxu0 0
        %906 = vmatpush1.bf16.msra.mxu0 0
        %907 = vmatprep.subr.bf16.mxu0 0
        %908 = vmatpush1.bf16.msra.mxu0 0
        %909 = vmatprep.subr.bf16.mxu0 0
        %910 = vmatpush1.bf16.msra.mxu0 0
        %911 = vmatprep.subr.bf16.mxu0 0
        %912 = vmatpush1.bf16.msra.mxu0 0
        %913 = vmatprep.subr.bf16.mxu0 0
        %914 = vmatpush1.bf16.msra.mxu0 0
        %915 = vmatprep.subr.bf16.mxu0 0
        %916 = vmatpush1.bf16.msra.mxu0 0
        %917 = vmatprep.subr.bf16.mxu0 0
        %918 = vmatpush1.bf16.msra.mxu0 %v901
        %919 = vmatprep.subr.bf16.mxu0 0
        %920 = vmatpush2.bf16.msra.mxu0 0
        %921 = vmatprep.subr.bf16.mxu0 0
        %922 = vmatpush2.bf16.msra.mxu0 0
        %923 = vmatprep.subr.bf16.mxu0 0
        %924 = vmatpush2.bf16.msra.mxu0 0
        %925 = vmatprep.subr.bf16.mxu0 0
        %926 = vmatpush2.bf16.msra.mxu0 0
        %927 = vmatprep.subr.bf16.mxu0 0
        %928 = vmatpush2.bf16.msra.mxu0 0
        %929 = vmatprep.subr.bf16.mxu0 0
        %930 = vmatpush2.bf16.msra.mxu0 0
        %931 = vmatprep.subr.bf16.mxu0 0
        %932 = vmatpush2.bf16.msra.mxu0 0
        %933 = vmatprep.subr.bf16.mxu0 0
        %934 = vmatpush2.bf16.msra.mxu0 0
        %935 = vmatprep.mubr.bf16.mxu0 0
        %936 = vmatmul.mubr.bf16.gmra.mxu0 %v853
        %v937 = vpop.f32.mrf.mxu0
        %v938 = vadd.f32 0.0, %v937
        %v939 = vpop.f32.mrf.mxu0
        %v940 = vpop.f32.mrf.mxu0
        %v941 = vadd.f32 0.0, %v940
        %v942 = vpop.f32.mrf.mxu0
        %943 = vmatprep.mubr.bf16.mxu0 0
        %944 = vmatmul.mubr.bf16.gmra.mxu0 %v856
        %v945 = vpop.f32.mrf.mxu0
        %v946 = vadd.f32 0.0, %v945
        %v947 = vpop.f32.mrf.mxu0
        %v948 = vpop.f32.mrf.mxu0
        %v949 = vadd.f32 0.0, %v948
        %v950 = vpop.f32.mrf.mxu0
        %951 = vmatprep.mubr.bf16.mxu0 0
        %952 = vmatmul.mubr.bf16.gmra.mxu0 %v859
        %v953 = vpop.f32.mrf.mxu0
        %v954 = vadd.f32 0.0, %v953
        %v955 = vpop.f32.mrf.mxu0
        %v956 = vpop.f32.mrf.mxu0
        %v957 = vadd.f32 0.0, %v956
        %v958 = vpop.f32.mrf.mxu0
        %959 = vmatprep.mubr.bf16.mxu0 0
        %960 = vmatmul.mubr.bf16.gmra.mxu0 %v862
        %v961 = vpop.f32.mrf.mxu0
        %v962 = vadd.f32 0.0, %v961
        %v963 = vpop.f32.mrf.mxu0
        %v964 = vpop.f32.mrf.mxu0
        %v965 = vadd.f32 0.0, %v964
        %v966 = vpop.f32.mrf.mxu0
        %967 = vmatprep.mubr.bf16.mxu0 0
        %968 = vmatmul.mubr.bf16.gmra.mxu0 %v865
        %v969 = vpop.f32.mrf.mxu0
        %v970 = vadd.f32 0.0, %v969
        %v971 = vpop.f32.mrf.mxu0
        %v972 = vpop.f32.mrf.mxu0
        %v973 = vadd.f32 0.0, %v972
        %v974 = vpop.f32.mrf.mxu0
        %975 = vmatprep.mubr.bf16.mxu0 0
        %976 = vmatmul.mubr.bf16.gmra.mxu0 %v868
        %v977 = vpop.f32.mrf.mxu0
        %v978 = vadd.f32 0.0, %v977
        %v979 = vpop.f32.mrf.mxu0
        %v980 = vpop.f32.mrf.mxu0
        %v981 = vadd.f32 0.0, %v980
        %v982 = vpop.f32.mrf.mxu0
        %983 = vmatprep.mubr.bf16.mxu0 0
        %984 = vmatmul.mubr.bf16.gmra.mxu0 %v871
        %v985 = vpop.f32.mrf.mxu0
        %v986 = vadd.f32 0.0, %v985
        %v987 = vpop.f32.mrf.mxu0
        %v988 = vpop.f32.mrf.mxu0
        %v989 = vadd.f32 0.0, %v988
        %v990 = vpop.f32.mrf.mxu0
        %991 = vmatprep.mubr.bf16.mxu0 0
        %992 = vmatmul.mubr.bf16.gmra.mxu0 %v874
        %v993 = vpop.f32.mrf.mxu0
        %v994 = vadd.f32 0.0, %v993
        %v995 = vpop.f32.mrf.mxu0
        %v996 = vpop.f32.mrf.mxu0
        %v997 = vadd.f32 0.0, %v996
        %v998 = vpop.f32.mrf.mxu0
        %999 = vmatprep.mubr.bf16.mxu0 0
        %1000 = vmatmul.mubr.bf16.gmra.mxu0 %v877
        %v1001 = vpop.f32.mrf.mxu0
        %v1002 = vadd.f32 0.0, %v1001
        %v1003 = vpop.f32.mrf.mxu0
        %v1004 = vpop.f32.mrf.mxu0
        %v1005 = vadd.f32 0.0, %v1004
        %v1006 = vpop.f32.mrf.mxu0
        %1007 = vmatprep.mubr.bf16.mxu0 0
        %1008 = vmatmul.mubr.bf16.gmra.mxu0 %v880
        %v1009 = vpop.f32.mrf.mxu0
        %v1010 = vadd.f32 0.0, %v1009
        %v1011 = vpop.f32.mrf.mxu0
        %v1012 = vpop.f32.mrf.mxu0
        %v1013 = vadd.f32 0.0, %v1012
        %v1014 = vpop.f32.mrf.mxu0
        %1015 = vmatprep.mubr.bf16.mxu0 0
        %1016 = vmatmul.mubr.bf16.gmra.mxu0 %v883
        %v1017 = vpop.f32.mrf.mxu0
        %v1018 = vadd.f32 0.0, %v1017
        %v1019 = vpop.f32.mrf.mxu0
        %v1020 = vpop.f32.mrf.mxu0
        %v1021 = vadd.f32 0.0, %v1020
        %v1022 = vpop.f32.mrf.mxu0
        %1023 = vmatprep.mubr.bf16.mxu0 0
        %1024 = vmatmul.mubr.bf16.gmra.mxu0 %v886
        %v1025 = vpop.f32.mrf.mxu0
        %v1026 = vadd.f32 0.0, %v1025
        %v1027 = vpop.f32.mrf.mxu0
        %v1028 = vpop.f32.mrf.mxu0
        %v1029 = vadd.f32 0.0, %v1028
        %v1030 = vpop.f32.mrf.mxu0
        %1031 = vmatprep.mubr.bf16.mxu0 0
        %1032 = vmatmul.mubr.bf16.gmra.mxu0 %v889
        %v1033 = vpop.f32.mrf.mxu0
        %v1034 = vadd.f32 0.0, %v1033
        %v1035 = vpop.f32.mrf.mxu0
        %v1036 = vpop.f32.mrf.mxu0
        %v1037 = vadd.f32 0.0, %v1036
        %v1038 = vpop.f32.mrf.mxu0
        %1039 = vmatprep.mubr.bf16.mxu0 0
        %1040 = vmatmul.mubr.bf16.gmra.mxu0 %v892
        %v1041 = vpop.f32.mrf.mxu0
        %v1042 = vadd.f32 0.0, %v1041
        %v1043 = vpop.f32.mrf.mxu0
        %v1044 = vpop.f32.mrf.mxu0
        %v1045 = vadd.f32 0.0, %v1044
        %v1046 = vpop.f32.mrf.mxu0
        %1047 = vmatprep.mubr.bf16.mxu0 0
        %1048 = vmatmul.mubr.bf16.gmra.mxu0 %v895
        %v1049 = vpop.f32.mrf.mxu0
        %v1050 = vadd.f32 0.0, %v1049
        %v1051 = vpop.f32.mrf.mxu0
        %v1052 = vpop.f32.mrf.mxu0
        %v1053 = vadd.f32 0.0, %v1052
        %v1054 = vpop.f32.mrf.mxu0
        %1055 = vmatprep.mubr.bf16.mxu0 0
        %1056 = vmatmul.mubr.bf16.gmra.mxu0 %v898
        %v1057 = vpop.f32.mrf.mxu0
        %v1058 = vadd.f32 0.0, %v1057
        %v1059 = vpop.f32.mrf.mxu0
        %v1060 = vpop.f32.mrf.mxu0
        %v1061 = vadd.f32 0.0, %v1060
        %v1062 = vpop.f32.mrf.mxu0
        %1063 = vdwg.mxu0
        %v1064 = vadd.f32 %v670, %v938
        %v1065 = vadd.f32 %v673, %v941
        %v1066 = vadd.f32 %v678, %v946
        %v1067 = vadd.f32 %v681, %v949
        %v1068 = vadd.f32 %v686, %v954
        %v1069 = vadd.f32 %v689, %v957
        %v1070 = vadd.f32 %v694, %v962
        %v1071 = vadd.f32 %v697, %v965
        %v1072 = vadd.f32 %v702, %v970
        %v1073 = vadd.f32 %v705, %v973
        %v1074 = vadd.f32 %v710, %v978
        %v1075 = vadd.f32 %v713, %v981
        %v1076 = vadd.f32 %v718, %v986
        %v1077 = vadd.f32 %v721, %v989
        %v1078 = vadd.f32 %v726, %v994
        %v1079 = vadd.f32 %v729, %v997
        %v1080 = vadd.f32 %v734, %v1002
        %v1081 = vadd.f32 %v737, %v1005
        %v1082 = vadd.f32 %v742, %v1010
        %v1083 = vadd.f32 %v745, %v1013
        %v1084 = vadd.f32 %v750, %v1018
        %v1085 = vadd.f32 %v753, %v1021
        %v1086 = vadd.f32 %v758, %v1026
        %v1087 = vadd.f32 %v761, %v1029
        %v1088 = vadd.f32 %v766, %v1034
        %v1089 = vadd.f32 %v769, %v1037
        %v1090 = vadd.f32 %v774, %v1042
        %v1091 = vadd.f32 %v777, %v1045
        %v1092 = vadd.f32 %v782, %v1050
        %v1093 = vadd.f32 %v785, %v1053
        %v1094 = vadd.f32 %v790, %v1058
        %v1095 = vadd.f32 %v793, %v1061
        %v1096 = vld [vmem:[%s2] sm:$0x1]
        %v1098 = vlaneseq
        %v1099 = vshrl.u32 %v1098, 7
        %v1100 = vsub.s32 0, %v1099
        %v1101 = vrot.slane %v1096, %v1100
        %v1103 = vadd.f32 %v1064, %v1101
        %v1104 = vadd.f32 %v1065, %v1101
        %v1105 = vadd.f32 %v1066, %v1101
        %v1106 = vadd.f32 %v1067, %v1101
        %v1107 = vadd.f32 %v1068, %v1101
        %v1108 = vadd.f32 %v1069, %v1101
        %v1109 = vadd.f32 %v1070, %v1101
        %v1110 = vadd.f32 %v1071, %v1101
        %v1111 = vadd.f32 %v1072, %v1101
        %v1112 = vadd.f32 %v1073, %v1101
        %v1113 = vadd.f32 %v1074, %v1101
        %v1114 = vadd.f32 %v1075, %v1101
        %v1115 = vadd.f32 %v1076, %v1101
        %v1116 = vadd.f32 %v1077, %v1101
        %v1117 = vadd.f32 %v1078, %v1101
        %v1118 = vadd.f32 %v1079, %v1101
        %v1119 = vadd.f32 %v1080, %v1101
        %v1120 = vadd.f32 %v1081, %v1101
        %v1121 = vadd.f32 %v1082, %v1101
        %v1122 = vadd.f32 %v1083, %v1101
        %v1123 = vadd.f32 %v1084, %v1101
        %v1124 = vadd.f32 %v1085, %v1101
        %v1125 = vadd.f32 %v1086, %v1101
        %v1126 = vadd.f32 %v1087, %v1101
        %v1127 = vadd.f32 %v1088, %v1101
        %v1128 = vadd.f32 %v1089, %v1101
        %v1129 = vadd.f32 %v1090, %v1101
        %v1130 = vadd.f32 %v1091, %v1101
        %v1131 = vadd.f32 %v1092, %v1101
        %v1132 = vadd.f32 %v1093, %v1101
        %v1133 = vadd.f32 %v1094, %v1101
        %v1134 = vadd.f32 %v1095, %v1101
        %v1135 = vmax.f32 %v1103, 0.0
        %v1136 = vmax.f32 %v1104, 0.0
        %v1137 = vmax.f32 %v1105, 0.0
        %v1138 = vmax.f32 %v1106, 0.0
        %v1139 = vmax.f32 %v1107, 0.0
        %v1140 = vmax.f32 %v1108, 0.0
        %v1141 = vmax.f32 %v1109, 0.0
        %v1142 = vmax.f32 %v1110, 0.0
        %v1143 = vmax.f32 %v1111, 0.0
        %v1144 = vmax.f32 %v1112, 0.0
        %v1145 = vmax.f32 %v1113, 0.0
        %v1146 = vmax.f32 %v1114, 0.0
        %v1147 = vmax.f32 %v1115, 0.0
        %v1148 = vmax.f32 %v1116, 0.0
        %v1149 = vmax.f32 %v1117, 0.0
        %v1150 = vmax.f32 %v1118, 0.0
        %v1151 = vmax.f32 %v1119, 0.0
        %v1152 = vmax.f32 %v1120, 0.0
        %v1153 = vmax.f32 %v1121, 0.0
        %v1154 = vmax.f32 %v1122, 0.0
        %v1155 = vmax.f32 %v1123, 0.0
        %v1156 = vmax.f32 %v1124, 0.0
        %v1157 = vmax.f32 %v1125, 0.0
        %v1158 = vmax.f32 %v1126, 0.0
        %v1159 = vmax.f32 %v1127, 0.0
        %v1160 = vmax.f32 %v1128, 0.0
        %v1161 = vmax.f32 %v1129, 0.0
        %v1162 = vmax.f32 %v1130, 0.0
        %v1163 = vmax.f32 %v1131, 0.0
        %v1164 = vmax.f32 %v1132, 0.0
        %v1165 = vmax.f32 %v1133, 0.0
        %v1166 = vmax.f32 %v1134, 0.0
        %v1167 = vpack.c.bf16 %v1136, %v1135
        %v1168 = vpack.c.bf16 %v1138, %v1137
        %v1169 = vpack.c.bf16 %v1140, %v1139
        %v1170 = vpack.c.bf16 %v1142, %v1141
        %v1171 = vpack.c.bf16 %v1144, %v1143
        %v1172 = vpack.c.bf16 %v1146, %v1145
        %v1173 = vpack.c.bf16 %v1148, %v1147
        %v1174 = vpack.c.bf16 %v1150, %v1149
        %v1175 = vpack.c.bf16 %v1152, %v1151
        %v1176 = vpack.c.bf16 %v1154, %v1153
        %v1177 = vpack.c.bf16 %v1156, %v1155
        %v1178 = vpack.c.bf16 %v1158, %v1157
        %v1179 = vpack.c.bf16 %v1160, %v1159
        %v1180 = vpack.c.bf16 %v1162, %v1161
        %v1181 = vpack.c.bf16 %v1164, %v1163
        %v1182 = vpack.c.bf16 %v1166, %v1165
        %v1183 = vld [vmem:[%s3] sm:$0x3]
        %v1184 = vld [vmem:[%s4] sm:$0x1]
        %v1186 = vlaneseq
        %v1187 = vshrl.u32 %v1186, 7
        %v1188 = vsub.s32 0, %v1187
        %v1189 = vrot.slane %v1184, %v1188
        %vm1191 = vcmask 31744
        %v1193 = vsel %vm1191, %v1167, 0
        %v1196 = vsel %vm1191, %v1168, 0
        %v1199 = vsel %vm1191, %v1169, 0
        %v1202 = vsel %vm1191, %v1170, 0
        %v1205 = vsel %vm1191, %v1171, 0
        %v1208 = vsel %vm1191, %v1172, 0
        %v1211 = vsel %vm1191, %v1173, 0
        %v1214 = vsel %vm1191, %v1174, 0
        %v1217 = vsel %vm1191, %v1175, 0
        %v1220 = vsel %vm1191, %v1176, 0
        %v1223 = vsel %vm1191, %v1177, 0
        %v1226 = vsel %vm1191, %v1178, 0
        %v1229 = vsel %vm1191, %v1179, 0
        %v1232 = vsel %vm1191, %v1180, 0
        %v1235 = vsel %vm1191, %v1181, 0
        %v1238 = vsel %vm1191, %v1182, 0
        %vm1240 = vcmask 1041408
        %v1242 = vsel %vm1240, %v1183, 0
        %1244 = vmatprep.subr.bf16.mxu0 0
        %1245 = vmatpush1.bf16.msra.mxu0 0
        %1246 = vmatprep.subr.bf16.mxu0 0
        %1247 = vmatpush1.bf16.msra.mxu0 0
        %1248 = vmatprep.subr.bf16.mxu0 0
        %1249 = vmatpush1.bf16.msra.mxu0 0
        %1250 = vmatprep.subr.bf16.mxu0 0
        %1251 = vmatpush1.bf16.msra.mxu0 0
        %1252 = vmatprep.subr.bf16.mxu0 0
        %1253 = vmatpush1.bf16.msra.mxu0 0
        %1254 = vmatprep.subr.bf16.mxu0 0
        %1255 = vmatpush1.bf16.msra.mxu0 0
        %1256 = vmatprep.subr.bf16.mxu0 0
        %1257 = vmatpush1.bf16.msra.mxu0 0
        %1258 = vmatprep.subr.bf16.mxu0 0
        %1259 = vmatpush1.bf16.msra.mxu0 %v1242
        %1260 = vmatprep.subr.bf16.mxu0 0
        %1261 = vmatpush2.bf16.msra.mxu0 0
        %1262 = vmatprep.subr.bf16.mxu0 0
        %1263 = vmatpush2.bf16.msra.mxu0 0
        %1264 = vmatprep.subr.bf16.mxu0 0
        %1265 = vmatpush2.bf16.msra.mxu0 0
        %1266 = vmatprep.subr.bf16.mxu0 0
        %1267 = vmatpush2.bf16.msra.mxu0 0
        %1268 = vmatprep.subr.bf16.mxu0 0
        %1269 = vmatpush2.bf16.msra.mxu0 0
        %1270 = vmatprep.subr.bf16.mxu0 0
        %1271 = vmatpush2.bf16.msra.mxu0 0
        %1272 = vmatprep.subr.bf16.mxu0 0
        %1273 = vmatpush2.bf16.msra.mxu0 0
        %1274 = vmatprep.subr.bf16.mxu0 0
        %1275 = vmatpush2.bf16.msra.mxu0 0
        %1276 = vmatprep.mubr.bf16.mxu0 0
        %1277 = vmatmul.mubr.bf16.gmra.mxu0 %v1193
        %v1278 = vpop.f32.mrf.mxu0
        %v1279 = vadd.f32 %v1189, %v1278
        %v1280 = vpop.f32.mrf.mxu0
        %v1281 = vpop.f32.mrf.mxu0
        %v1282 = vadd.f32 %v1189, %v1281
        %v1283 = vpop.f32.mrf.mxu0
        %1284 = vmatprep.mubr.bf16.mxu0 0
        %1285 = vmatmul.mubr.bf16.gmra.mxu0 %v1196
        %v1286 = vpop.f32.mrf.mxu0
        %v1287 = vadd.f32 %v1189, %v1286
        %v1288 = vpop.f32.mrf.mxu0
        %v1289 = vpop.f32.mrf.mxu0
        %v1290 = vadd.f32 %v1189, %v1289
        %v1291 = vpop.f32.mrf.mxu0
        %1292 = vmatprep.mubr.bf16.mxu0 0
        %1293 = vmatmul.mubr.bf16.gmra.mxu0 %v1199
        %v1294 = vpop.f32.mrf.mxu0
        %v1295 = vadd.f32 %v1189, %v1294
        %v1296 = vpop.f32.mrf.mxu0
        %v1297 = vpop.f32.mrf.mxu0
        %v1298 = vadd.f32 %v1189, %v1297
        %v1299 = vpop.f32.mrf.mxu0
        %1300 = vmatprep.mubr.bf16.mxu0 0
        %1301 = vmatmul.mubr.bf16.gmra.mxu0 %v1202
        %v1302 = vpop.f32.mrf.mxu0
        %v1303 = vadd.f32 %v1189, %v1302
        %v1304 = vpop.f32.mrf.mxu0
        %v1305 = vpop.f32.mrf.mxu0
        %v1306 = vadd.f32 %v1189, %v1305
        %v1307 = vpop.f32.mrf.mxu0
        %1308 = vmatprep.mubr.bf16.mxu0 0
        %1309 = vmatmul.mubr.bf16.gmra.mxu0 %v1205
        %v1310 = vpop.f32.mrf.mxu0
        %v1311 = vadd.f32 %v1189, %v1310
        %v1312 = vpop.f32.mrf.mxu0
        %v1313 = vpop.f32.mrf.mxu0
        %v1314 = vadd.f32 %v1189, %v1313
        %v1315 = vpop.f32.mrf.mxu0
        %1316 = vmatprep.mubr.bf16.mxu0 0
        %1317 = vmatmul.mubr.bf16.gmra.mxu0 %v1208
        %v1318 = vpop.f32.mrf.mxu0
        %v1319 = vadd.f32 %v1189, %v1318
        %v1320 = vpop.f32.mrf.mxu0
        %v1321 = vpop.f32.mrf.mxu0
        %v1322 = vadd.f32 %v1189, %v1321
        %v1323 = vpop.f32.mrf.mxu0
        %1324 = vmatprep.mubr.bf16.mxu0 0
        %1325 = vmatmul.mubr.bf16.gmra.mxu0 %v1211
        %v1326 = vpop.f32.mrf.mxu0
        %v1327 = vadd.f32 %v1189, %v1326
        %v1328 = vpop.f32.mrf.mxu0
        %v1329 = vpop.f32.mrf.mxu0
        %v1330 = vadd.f32 %v1189, %v1329
        %v1331 = vpop.f32.mrf.mxu0
        %1332 = vmatprep.mubr.bf16.mxu0 0
        %1333 = vmatmul.mubr.bf16.gmra.mxu0 %v1214
        %v1334 = vpop.f32.mrf.mxu0
        %v1335 = vadd.f32 %v1189, %v1334
        %v1336 = vpop.f32.mrf.mxu0
        %v1337 = vpop.f32.mrf.mxu0
        %v1338 = vadd.f32 %v1189, %v1337
        %v1339 = vpop.f32.mrf.mxu0
        %1340 = vmatprep.mubr.bf16.mxu0 0
        %1341 = vmatmul.mubr.bf16.gmra.mxu0 %v1217
        %v1342 = vpop.f32.mrf.mxu0
        %v1343 = vadd.f32 %v1189, %v1342
        %v1344 = vpop.f32.mrf.mxu0
        %v1345 = vpop.f32.mrf.mxu0
        %v1346 = vadd.f32 %v1189, %v1345
        %v1347 = vpop.f32.mrf.mxu0
        %1348 = vmatprep.mubr.bf16.mxu0 0
        %1349 = vmatmul.mubr.bf16.gmra.mxu0 %v1220
        %v1350 = vpop.f32.mrf.mxu0
        %v1351 = vadd.f32 %v1189, %v1350
        %v1352 = vpop.f32.mrf.mxu0
        %v1353 = vpop.f32.mrf.mxu0
        %v1354 = vadd.f32 %v1189, %v1353
        %v1355 = vpop.f32.mrf.mxu0
        %1356 = vmatprep.mubr.bf16.mxu0 0
        %1357 = vmatmul.mubr.bf16.gmra.mxu0 %v1223
        %v1358 = vpop.f32.mrf.mxu0
        %v1359 = vadd.f32 %v1189, %v1358
        %v1360 = vpop.f32.mrf.mxu0
        %v1361 = vpop.f32.mrf.mxu0
        %v1362 = vadd.f32 %v1189, %v1361
        %v1363 = vpop.f32.mrf.mxu0
        %1364 = vmatprep.mubr.bf16.mxu0 0
        %1365 = vmatmul.mubr.bf16.gmra.mxu0 %v1226
        %v1366 = vpop.f32.mrf.mxu0
        %v1367 = vadd.f32 %v1189, %v1366
        %v1368 = vpop.f32.mrf.mxu0
        %v1369 = vpop.f32.mrf.mxu0
        %v1370 = vadd.f32 %v1189, %v1369
        %v1371 = vpop.f32.mrf.mxu0
        %1372 = vmatprep.mubr.bf16.mxu0 0
        %1373 = vmatmul.mubr.bf16.gmra.mxu0 %v1229
        %v1374 = vpop.f32.mrf.mxu0
        %v1375 = vadd.f32 %v1189, %v1374
        %v1376 = vpop.f32.mrf.mxu0
        %v1377 = vpop.f32.mrf.mxu0
        %v1378 = vadd.f32 %v1189, %v1377
        %v1379 = vpop.f32.mrf.mxu0
        %1380 = vmatprep.mubr.bf16.mxu0 0
        %1381 = vmatmul.mubr.bf16.gmra.mxu0 %v1232
        %v1382 = vpop.f32.mrf.mxu0
        %v1383 = vadd.f32 %v1189, %v1382
        %v1384 = vpop.f32.mrf.mxu0
        %v1385 = vpop.f32.mrf.mxu0
        %v1386 = vadd.f32 %v1189, %v1385
        %v1387 = vpop.f32.mrf.mxu0
        %1388 = vmatprep.mubr.bf16.mxu0 0
        %1389 = vmatmul.mubr.bf16.gmra.mxu0 %v1235
        %v1390 = vpop.f32.mrf.mxu0
        %v1391 = vadd.f32 %v1189, %v1390
        %v1392 = vpop.f32.mrf.mxu0
        %v1393 = vpop.f32.mrf.mxu0
        %v1394 = vadd.f32 %v1189, %v1393
        %v1395 = vpop.f32.mrf.mxu0
        %1396 = vmatprep.mubr.bf16.mxu0 0
        %1397 = vmatmul.mubr.bf16.gmra.mxu0 %v1238
        %v1398 = vpop.f32.mrf.mxu0
        %v1399 = vadd.f32 %v1189, %v1398
        %v1400 = vpop.f32.mrf.mxu0
        %v1401 = vpop.f32.mrf.mxu0
        %v1402 = vadd.f32 %v1189, %v1401
        %v1403 = vpop.f32.mrf.mxu0
        %1404 = vdwg.mxu0
        %1405 = vst [vmem:[%s244] sm:$0xff] %v1279
        %1406 = vst [vmem:[%s244 + $0x8] sm:$0xff] %v1282
        %1407 = vst [vmem:[%s244 + $0x10] sm:$0xff] %v1287
        %1408 = vst [vmem:[%s244 + $0x18] sm:$0xff] %v1290
        %1409 = vst [vmem:[%s244 + $0x20] sm:$0xff] %v1295
        %1410 = vst [vmem:[%s244 + $0x28] sm:$0xff] %v1298
        %1411 = vst [vmem:[%s244 + $0x30] sm:$0xff] %v1303
        %1412 = vst [vmem:[%s244 + $0x38] sm:$0xff] %v1306
        %1413 = vst [vmem:[%s244 + $0x40] sm:$0xff] %v1311
        %1414 = vst [vmem:[%s244 + $0x48] sm:$0xff] %v1314
        %1415 = vst [vmem:[%s244 + $0x50] sm:$0xff] %v1319
        %1416 = vst [vmem:[%s244 + $0x58] sm:$0xff] %v1322
        %1417 = vst [vmem:[%s244 + $0x60] sm:$0xff] %v1327
        %1418 = vst [vmem:[%s244 + $0x68] sm:$0xff] %v1330
        %1419 = vst [vmem:[%s244 + $0x70] sm:$0xff] %v1335
        %1420 = vst [vmem:[%s244 + $0x78] sm:$0xff] %v1338
        %1421 = vst [vmem:[%s244 + $0x80] sm:$0xff] %v1343
        %1422 = vst [vmem:[%s244 + $0x88] sm:$0xff] %v1346
        %1423 = vst [vmem:[%s244 + $0x90] sm:$0xff] %v1351
        %1424 = vst [vmem:[%s244 + $0x98] sm:$0xff] %v1354
        %1425 = vst [vmem:[%s244 + $0xa0] sm:$0xff] %v1359
        %1426 = vst [vmem:[%s244 + $0xa8] sm:$0xff] %v1362
        %1427 = vst [vmem:[%s244 + $0xb0] sm:$0xff] %v1367
        %1428 = vst [vmem:[%s244 + $0xb8] sm:$0xff] %v1370
        %1429 = vst [vmem:[%s244 + $0xc0] sm:$0xff] %v1375
        %1430 = vst [vmem:[%s244 + $0xc8] sm:$0xff] %v1378
        %1431 = vst [vmem:[%s244 + $0xd0] sm:$0xff] %v1383
        %1432 = vst [vmem:[%s244 + $0xd8] sm:$0xff] %v1386
        %1433 = vst [vmem:[%s244 + $0xe0] sm:$0xff] %v1391
        %1434 = vst [vmem:[%s244 + $0xe8] sm:$0xff] %v1394
        %1435 = vst [vmem:[%s244 + $0xf0] sm:$0xff] %v1399
        %1436 = vst [vmem:[%s244 + $0xf8] sm:$0xff] %v1402
        %s1437 = sand.u32 %s153, 1
        %s1438 = scalar_lea.sflag [#allocation3], %s1437
        %s1439 = sand.u32 %s153, 1
        %s1440 = smul.addr %s1439, 256
        %s1441 = scalar_lea.vmem [#allocation2], %s1440
        // Predicated region
        $region41: #{tpu_custom_call.1} parent=39 // pred_check
          %p1442 = pneg %p163
        $region42: #{tpu_custom_call.1} parent=39 // pred_check_branch
          %1444 = sbr.rel (%p1442) target = $region44
        $region43: #{tpu_custom_call.1} parent=39 // pred_region
          %s1445 = sadd.s32 %s23, %s24
          %s1446 = smul.u32 32, %s1445
          %s1448 = ssub.s32 4096, 4096
          %1449 = vsyncadd %s1438, %s1448
          %s1450 = smul.addr %s1446, 128
          %s1451 = scalar_lea.hbm %s5, %s1450
          %s1452 = sshll.u32 %s1441, 4
          %s1453 = int_to_ptr.vmem [resolvable:$true] %s1452
          %1458 = dma.vmem_to_hbm [thread:$0]  %s1453, 4096, %s1451, %s1438, 128, 128, 8
        $region44: #{tpu_custom_call.1} parent=39 // pred_fallthru
          _
      $region40: #{tpu_custom_call.1} parent=5 // pred_fallthru
        _
      %p1459 = scmp.le.s32.totalorder 2, %s14
      // Predicated region
      $region45: #{tpu_custom_call.1} parent=5 // pred_check
        %p1460 = pneg %p1459
      $region46: #{tpu_custom_call.1} parent=5 // pred_check_branch
        %1462 = sbr.rel (%p1460) target = $region48
      $region47: #{tpu_custom_call.1} parent=5 // pred_region
        %s1463 = ssub.s32 %s14, 2
        // Predicated region
        $region49: #{tpu_custom_call.1} parent=47 // pred_check
          %p1464 = pneg %p169
        $region50: #{tpu_custom_call.1} parent=47 // pred_check_branch
          %1466 = sbr.rel (%p1464) target = $region52
        $region51: #{tpu_custom_call.1} parent=47 // pred_region
          %s1467 = sand.u32 %s154, 1
          %s1468 = scalar_lea.sflag [#allocation3], %s1467
          %s1469 = sand.u32 %s154, 1
          %s1470 = smul.addr %s1469, 256
          %s1471 = scalar_lea.vmem [#allocation2], %s1470
          %1472 = dma.done %s1468, 4096
        $region52: #{tpu_custom_call.1} parent=47 // pred_fallthru
          _
      $region48: #{tpu_custom_call.1} parent=5 // pred_fallthru
        _
    $region6: #{tpu_custom_call.1} parent=1 // loop_footer
      %s18 = sadd.s32 1, %s14
    $region7: #{tpu_custom_call.1} parent=1 // loop_footer_branch
      %13 = sbr.rel target = $region3
    $region8: #{tpu_custom_call.1} parent=1 // loop_exit
      _
    %1473 = vsyncpa [#allocation3], 1
    %s1474 = scalar_lea.sflag [#allocation3], 1
    %1475 = vsyncpa %s1474, 1

</llo_original>
